<compile_context>
chip_gen: v5e
topology: v5e:2x2
jax: 0.10.0
libtpu: 0.0.40
codegen_flags: <defaults>
</compile_context>

<pallas_src>
import numpy as np
import jax
import jax.numpy as jnp
from jax.experimental import pallas as pl
from jax.experimental.pallas import tpu as pltpu

DIM = 7                   # dim1 == dim2 == dim3 == number of classes
AUG = DIM + 1             # 8: per-gate slot width (7 features + const-1 / zero pad)
PACK = 3 * AUG            # 24: packed [v1|v2|v3] / [h1|h2|h3] / [o1'|o2'|o3'] lanes
SELW = 4 * AUG * AUG      # 256: fused outer-product selector lanes
W0_N = SELW + PACK        # 280: [outer-product selectors | block-diag h weights]
KRON = AUG ** 3           # 512: flattened trilinear Kronecker width
MMHID = 96                # logical hidden width of encoder1 / encoder2
MM_PAD = 128              # lane-padded hidden width inside the kernel
W1_N = 3 * KRON + MM_PAD  # 1664: [Kron selectors x3 | enc2 skip rows]
OUT_W = 40                # coalesced output: [res | vec4 | z1 z2 z3]


# ----------------------------------------------------------------------------
# Pallas kernel: the entire forward pass for one batch tile.
# ----------------------------------------------------------------------------
def _fusion_kernel(v_ref, w0_ref, zw_ref, ow_ref, w1_ref,
                   e1w_ref, e2wm_ref, cw_ref, bias_ref, mixw_ref, out_ref):
    f32 = jnp.float32
    bf16 = jnp.bfloat16

    def mm(a, w_ref):
        # bf16 MXU operands (== previous DEFAULT single-pass precision on f32),
        # f32 accumulation.  LHS is cast only at the dot input.
        return jnp.dot(a.astype(bf16), w_ref[...], preferred_element_type=f32)

    def relu(x):
        return jnp.maximum(x, 0.0)

    def sigmoid(x):
        return 0.5 * jnp.tanh(0.5 * x) + 0.5           # single EUP op

    v = v_ref[...]                                      # (B, 24) f32: [v1 | v2 | v3]

    bias = bias_ref[...]                                # (8, 128) f32 bias pack
    hb = bias[0:1, 0:PACK]
    zb = bias[1:2, 0:PACK]
    ob = bias[2:3, 0:PACK]                              # lanes 7/15/23 == 1 (const-1 fold)
    e1b = bias[3:4, :]
    e2b = bias[4:5, :]
    cb = bias[5:6, 0:AUG]

    # --- fused outer-product selectors + block-diag h layer: one (B,24)@(24,280) ---
    s0 = mm(v, w0_ref)                                  # (B, 280)
    ac = s0[:, 0:2 * AUG * AUG] * s0[:, 2 * AUG * AUG:SELW]   # (B,128): [v1⊗v3 | v2⊗v1]
    h = relu(s0[:, SELW:] + hb)                         # (B,24): [h1|h2|h3], lanes 7/15/23 == 0

    # --- fused bilinear gates (z1/z3 share the v1⊗v3 LHS): one (B,128)@(128,24) ----
    z_all = mm(ac, zw_ref) + zb                         # (B,24): [z1|z2|z3]
    gated = sigmoid(z_all) * h                          # lanes 7/15/23 stay 0

    # --- fused o-layers, constant-1 append folded into the bias (dropout==identity) -
    o_all = relu(mm(gated, ow_ref) + ob)                # (B,24): [o1'|o2'|o3'], 7/15/23 == 1

    # --- fused Kronecker selectors + enc2 skip rows: one (B,24)@(24,1664) -----------
    s1 = mm(o_all, w1_ref)                              # (B, 1664)
    o123 = s1[:, 0:KRON] * s1[:, KRON:2 * KRON] * s1[:, 2 * KRON:3 * KRON]   # (B,512)
    skip = s1[:, 3 * KRON:]                             # (B,128): [o1'|o2'|o3'] @ e2_skip

    # --- encoders (post-fusion dropout == identity) ---------------------------------
    enc1 = relu(mm(o123, e1w_ref) + e1b)                # (B,128), lanes 96:128 == 0
    enc2 = relu(mm(enc1, e2wm_ref) + skip + e2b)        # (B,128)

    # --- classifier + masked log_softmax over the 7 real classes --------------------
    logits = mm(enc2, cw_ref) + cb                      # (B, 8)
    col = jax.lax.broadcasted_iota(jnp.int32, logits.shape, 1)
    valid = col < DIM
    ml = jnp.where(valid, logits, jnp.full_like(logits, -1e30))
    mx = jnp.max(ml, axis=-1, keepdims=True)
    sh = ml - mx
    lse = jnp.log(jnp.sum(jnp.where(valid, jnp.exp(sh), 0.0), axis=-1, keepdims=True))
    vec4 = jnp.where(valid, sh - lse, 0.0)              # (B,8), col 7 == 0

    # --- weighted residual mix (PyTorch uses the RAW self.weights); v kept in f32 ---
    res = (mixw_ref[0] * v[:, 0:AUG] + mixw_ref[1] * v[:, AUG:2 * AUG]
           + mixw_ref[2] * v[:, 2 * AUG:PACK] + mixw_ref[3] * vec4)

    # --- single coalesced writeback --------------------------------------------------
    out_ref[:, 0:8] = res
    out_ref[:, 8:16] = vec4
    out_ref[:, 16:40] = z_all


# ----------------------------------------------------------------------------
# Build the fused / padded kernel-side weights from the logical parameters.
# ----------------------------------------------------------------------------
def _prepare_kernel_params(p):
    def pad2(w, rows, cols):
        w = np.asarray(w, np.float32)
        out = np.zeros((rows, cols), np.float32)
        out[:w.shape[0], :w.shape[1]] = w
        return out

    def sel_left(m, n):               # (a @ sel)[b, k] = a[b, k // n]
        s = np.zeros((m, m * n), np.float32)
        for i in range(m):
            s[i, i * n:(i + 1) * n] = 1.0
        return s

    def sel_right(m, n):              # (a @ sel)[b, k] = a[b, k % n]
        s = np.zeros((n, m * n), np.float32)
        for j in range(n):
            s[j, j::n] = 1.0
        return s

    a88 = sel_left(AUG, AUG)          # (8, 64)
    b88 = sel_right(AUG, AUG)         # (8, 64)
    p1 = sel_left(AUG, AUG * AUG)     # (8, 512): factor o1'[k // 64]
    p2 = np.tile(a88, (1, AUG))       # (8, 512): factor o2'[(k // 8) % 8]
    p3 = sel_right(AUG * AUG, AUG)    # (8, 512): factor o3'[k % 8]

    # --- W0 (24, 280): [v1@a | v2@a | v3@b | v1@b | block-diag h1/h2/h3] ------------
    w0 = np.zeros((PACK, W0_N), np.float32)
    w0[0:8, 0:64] = a88               # v1 @ a88  -> ac left lanes 0:64
    w0[8:16, 64:128] = a88            # v2 @ a88  -> ac left lanes 64:128
    w0[16:24, 128:192] = b88          # v3 @ b88  -> ac right lanes 0:64
    w0[0:8, 192:256] = b88            # v1 @ b88  -> ac right lanes 64:128
    for g, r0 in ((1, 0), (2, 8), (3, 16)):
        w0[r0:r0 + 8, SELW + r0:SELW + r0 + 8] = pad2(p[f"h{g}w"], AUG, AUG)

    # --- Zw (128, 24): z1 (LHS=v1⊗v3), z2 (LHS=v2⊗v1), z3 (LHS=v1⊗v3) ---------------
    def zmat(w3d):
        w3 = np.zeros((AUG, AUG, AUG), np.float32)
        w3[:DIM, :DIM, :DIM] = np.asarray(w3d, np.float32)        # (O, I, J)
        return np.transpose(w3, (1, 2, 0)).reshape(AUG * AUG, AUG)  # (64, 8)

    zw = np.zeros((2 * AUG * AUG, PACK), np.float32)
    zw[0:64, 0:8] = zmat(p["z1w3d"])
    zw[64:128, 8:16] = zmat(p["z2w3d"])
    zw[0:64, 16:24] = zmat(p["z3w3d"])                  # (v1, v3) again, per the spec

    # --- Ow (24, 24) block-diag; bias pack rows (constant-1 fold at lanes 7/15/23) --
    ow = np.zeros((PACK, PACK), np.float32)
    hb = np.zeros((1, PACK), np.float32)
    zb = np.zeros((1, PACK), np.float32)
    ob = np.zeros((1, PACK), np.float32)
    for g, r0 in ((1, 0), (2, 8), (3, 16)):
        ow[r0:r0 + 8, r0:r0 + 8] = pad2(p[f"o{g}w"], AUG, AUG)
        hb[0, r0:r0 + DIM] = np.asarray(p[f"h{g}b"], np.float32).reshape(-1)
        zb[0, r0:r0 + DIM] = np.asarray(p[f"z{g}b"], np.float32).reshape(-1)
        ob[0, r0:r0 + DIM] = np.asarray(p[f"o{g}b"], np.float32).reshape(-1)
        ob[0, r0 + DIM] = 1.0                           # relu(0 + 1) == 1 -> appended 1

    # --- W1 (24, 1664): [p1 | p2 | p3 | enc2 skip rows for o1'/o2'/o3'] --------------
    e2 = np.asarray(p["e2w_full"], np.float32)          # (120, 96): rows enc1|o1'|o2'|o3'
    w1 = np.zeros((PACK, W1_N), np.float32)
    w1[0:8, 0:KRON] = p1
    w1[8:16, KRON:2 * KRON] = p2
    w1[16:24, 2 * KRON:3 * KRON] = p3
    w1[0:PACK, 3 * KRON:3 * KRON + MMHID] = e2[MMHID:MMHID + PACK]

    e1w = pad2(p["e1w"], KRON, MM_PAD)
    e2wm = pad2(e2[:MMHID], MM_PAD, MM_PAD)
    cw = pad2(p["cw"], MM_PAD, AUG)

    bias = np.zeros((8, MM_PAD), np.float32)
    bias[0, 0:PACK] = hb
    bias[1, 0:PACK] = zb
    bias[2, 0:PACK] = ob
    bias[3, 0:MMHID] = np.asarray(p["e1b"], np.float32).reshape(-1)
    bias[4, 0:MMHID] = np.asarray(p["e2b"], np.float32).reshape(-1)
    bias[5, 0:DIM] = np.asarray(p["cb"], np.float32).reshape(-1)

    bf = jnp.bfloat16
    return dict(
        w0=jnp.asarray(w0, bf), zw=jnp.asarray(zw, bf), ow=jnp.asarray(ow, bf),
        w1=jnp.asarray(w1, bf), e1w=jnp.asarray(e1w, bf), e2wm=jnp.asarray(e2wm, bf),
        cw=jnp.asarray(cw, bf), bias=jnp.asarray(bias, jnp.float32),
    )


# ----------------------------------------------------------------------------
# Wrapper
# ----------------------------------------------------------------------------
def trilinear_fusion_b(vec1, vec2, vec3, params, *, block_b=None):
    B = vec1.shape[0]
    if block_b is None:
        # >=2 grid steps for any reasonable B (v7x: both TCs get work; all chips:
        # DMA/compute overlap); 512-row cap keeps f32 intermediates well inside
        # v5e's 16 MiB scoped-VMEM default.
        block_b = min(512, max(8, ((-(-B // 2) + 7) // 8) * 8))
    block_b = max(8, ((block_b + 7) // 8) * 8)
    B_pad = ((B + block_b - 1) // block_b) * block_b
    grid = (B_pad // block_b,)

    # Pack [v1 | v2 | v3] into a single (B_pad, 24) f32 array (one DMA stream);
    # lanes 7 / 15 / 23 stay exactly zero (required by the constant-1 fold).
    v = jnp.zeros((B_pad, PACK), jnp.float32)
    v = v.at[:B, 0:DIM].set(vec1.astype(jnp.float32))
    v = v.at[:B, AUG:AUG + DIM].set(vec2.astype(jnp.float32))
    v = v.at[:B, 2 * AUG:2 * AUG + DIM].set(vec3.astype(jnp.float32))

    kp = _prepare_kernel_params(params)
    mixw = jnp.asarray(params["mixw"], jnp.float32).reshape(-1)   # (4,) SMEM scalars

    def wspec(w):
        return pl.BlockSpec(w.shape, lambda i: (0, 0))

    in_specs = [
        pl.BlockSpec((block_b, PACK), lambda i: (i, 0)),
        wspec(kp["w0"]), wspec(kp["zw"]), wspec(kp["ow"]), wspec(kp["w1"]),
        wspec(kp["e1w"]), wspec(kp["e2wm"]), wspec(kp["cw"]), wspec(kp["bias"]),
        pl.BlockSpec(memory_space=pltpu.MemorySpace.SMEM),
    ]
    out_spec = pl.BlockSpec((block_b, OUT_W), lambda i: (i, 0))

    out = pl.pallas_call(
        _fusion_kernel,
        grid=grid,
        in_specs=in_specs,
        out_specs=out_spec,
        out_shape=jax.ShapeDtypeStruct((B_pad, OUT_W), jnp.float32),
        compiler_params=pltpu.CompilerParams(dimension_semantics=("parallel",)),
    )(v, kp["w0"], kp["zw"], kp["ow"], kp["w1"], kp["e1w"], kp["e2wm"],
      kp["cw"], kp["bias"], mixw)

    res = out[:B, 0:DIM]
    vec4 = out[:B, 8:8 + DIM]
    z1 = out[:B, 16:16 + DIM]
    z2 = out[:B, 24:24 + DIM]
    z3 = out[:B, 32:32 + DIM]
    return res, vec4, [z1, z2, z3]


# ----------------------------------------------------------------------------
# Deterministic parameter construction (mirrors init_max_weights: Linear weight
# ~ N(0, 1/sqrt(fan_in)), Linear bias = 0; Bilinear gets a deterministic random
# 3-D weight and a small bias).  Weights are stored as (in, out).
# ----------------------------------------------------------------------------
def init_params(key):
    keys = iter(jax.random.split(key, 16))

    def linear_w(k, fan_in, fan_out):
        std = 1.0 / np.sqrt(fan_in)
        return std * jax.random.normal(k, (fan_in, fan_out), jnp.float32)

    p = {}
    for g in (1, 2, 3):
        p[f"h{g}w"] = linear_w(next(keys), DIM, DIM)
        p[f"h{g}b"] = jnp.zeros((1, DIM), jnp.float32)
        p[f"z{g}w3d"] = (1.0 / DIM) * jax.random.normal(next(keys), (DIM, DIM, DIM),
                                                        jnp.float32)
        p[f"z{g}b"] = 0.01 * jax.random.normal(next(keys), (1, DIM), jnp.float32)
        p[f"o{g}w"] = linear_w(next(keys), DIM, DIM)
        p[f"o{g}b"] = jnp.zeros((1, DIM), jnp.float32)

    p["e1w"] = linear_w(next(keys), KRON, MMHID)
    p["e1b"] = jnp.zeros((1, MMHID), jnp.float32)
    p["e2w_full"] = linear_w(next(keys), MMHID + 3 * AUG, MMHID)   # rows: enc1|o1'|o2'|o3'
    p["e2b"] = jnp.zeros((1, MMHID), jnp.float32)
    p["cw"] = linear_w(next(keys), MMHID, DIM)
    p["cb"] = jnp.zeros((1, DIM), jnp.float32)
    p["mixw"] = jnp.ones((1, 4), jnp.float32)            # nn.Parameter(torch.ones(4))
    return p


# ----------------------------------------------------------------------------
# High-precision (float64, numpy) reference mirroring the PyTorch forward.
# ----------------------------------------------------------------------------
def reference_forward(vec1, vec2, vec3, p):
    f = lambda x: np.asarray(x, np.float64)
    v1, v2, v3 = f(vec1), f(vec2), f(vec3)
    relu = lambda x: np.maximum(x, 0.0)
    sigmoid = lambda x: 1.0 / (1.0 + np.exp(-x))

    def linear(x, w, b):
        return x @ f(w) + f(b)

    def bilinear(a, c, w3, b):
        return np.einsum("bi,oij,bj->bo", a, f(w3), c) + f(b)

    h1 = relu(linear(v1, p["h1w"], p["h1b"]))
    z1 = bilinear(v1, v3, p["z1w3d"], p["z1b"])
    o1 = relu(linear(sigmoid(z1) * h1, p["o1w"], p["o1b"]))

    h2 = relu(linear(v2, p["h2w"], p["h2b"]))
    z2 = bilinear(v2, v1, p["z2w3d"], p["z2b"])
    o2 = relu(linear(sigmoid(z2) * h2, p["o2w"], p["o2b"]))

    h3 = relu(linear(v3, p["h3w"], p["h3b"]))
    z3 = bilinear(v1, v3, p["z3w3d"], p["z3b"])   # NOTE: (v1, v3), exactly as in the spec
    o3 = relu(linear(sigmoid(z3) * h3, p["o3w"], p["o3b"]))

    B = v1.shape[0]
    ones = np.ones((B, 1), np.float64)
    o1p = np.concatenate([o1, ones], axis=1)
    o2p = np.concatenate([o2, ones], axis=1)
    o3p = np.concatenate([o3, ones], axis=1)

    o12 = (o1p[:, :, None] * o2p[:, None, :]).reshape(B, -1)
    o123 = (o12[:, :, None] * o3p[:, None, :]).reshape(B, -1)

    out = relu(o123 @ f(p["e1w"]) + f(p["e1b"]))
    out = np.concatenate([out, o1p, o2p, o3p], axis=1)
    out = relu(out @ f(p["e2w_full"]) + f(p["e2b"]))

    logits = out @ f(p["cw"]) + f(p["cb"])
    mx = logits.max(-1, keepdims=True)
    lse = np.log(np.exp(logits - mx).sum(-1, keepdims=True)) + mx
    vec4 = logits - lse
    w = np.asarray(p["mixw"], np.float64)[0]
    results = w[0] * v1 + w[1] * v2 + w[2] * v3 + w[3] * vec4
    return results, vec4, [z1, z2, z3]


if __name__ == "__main__":
    key = jax.random.PRNGKey(0)
    kparam, k1, k2, k3 = jax.random.split(key, 4)
    params = init_params(kparam)

    B = 16
    vec1 = jax.random.normal(k1, (B, DIM), jnp.float32)
    vec2 = jax.random.normal(k2, (B, DIM), jnp.float32)
    vec3 = jax.random.normal(k3, (B, DIM), jnp.float32)

    res, vec4, (z1, z2, z3) = trilinear_fusion_b(vec1, vec2, vec3, params)
    jax.block_until_ready((res, vec4, z1, z2, z3))

    r_res, r_vec4, (rz1, rz2, rz3) = reference_forward(vec1, vec2, vec3, params)

    # Tolerances account for bf16 MXU operands (== DEFAULT single-pass precision)
    # vs. a float64 reference; structural errors would be O(1).
    tol = dict(rtol=5e-2, atol=5e-2)
    np.testing.assert_allclose(np.asarray(res), r_res, **tol)
    np.testing.assert_allclose(np.asarray(vec4), r_vec4, **tol)
    for a, b in zip((z1, z2, z3), (rz1, rz2, rz3)):
        np.testing.assert_allclose(np.asarray(a), b, **tol)

    print("KERNEL_OK")
</pallas_src>

<mosaic_0001>
module attributes {stable_mosaic.version = 11 : i64} {
  func.func @_fusion_kernel(%arg0: i32, %arg1: memref<8x24xf32, #tpu.memory_space<vmem>>, %arg2: memref<24x280xbf16, #tpu.memory_space<vmem>>, %arg3: memref<128x24xbf16, #tpu.memory_space<vmem>>, %arg4: memref<24x24xbf16, #tpu.memory_space<vmem>>, %arg5: memref<24x1664xbf16, #tpu.memory_space<vmem>>, %arg6: memref<512x128xbf16, #tpu.memory_space<vmem>>, %arg7: memref<128x128xbf16, #tpu.memory_space<vmem>>, %arg8: memref<128x8xbf16, #tpu.memory_space<vmem>>, %arg9: memref<8x128xf32, #tpu.memory_space<vmem>>, %arg10: memref<4xf32, #tpu.memory_space<smem>>, %arg11: memref<8x40xf32, #tpu.memory_space<vmem>>) attributes {dimension_semantics = [#tpu.dimension_semantics<parallel>], iteration_bounds = array<i64: 2>, scalar_prefetch = 0 : i64, scratch_operands = 0 : i64, tpu.core_type = #tpu.core_type<tc>, window_params = [{transform_indices = @transform_0, window_bounds = array<i64: 8, 24>}, {pipeline_mode = #tpu.pipeline_mode<synchronous>, transform_indices = @transform_1, window_bounds = array<i64: 24, 280>}, {pipeline_mode = #tpu.pipeline_mode<synchronous>, transform_indices = @transform_2, window_bounds = array<i64: 128, 24>}, {pipeline_mode = #tpu.pipeline_mode<synchronous>, transform_indices = @transform_3, window_bounds = array<i64: 24, 24>}, {pipeline_mode = #tpu.pipeline_mode<synchronous>, transform_indices = @transform_4, window_bounds = array<i64: 24, 1664>}, {pipeline_mode = #tpu.pipeline_mode<synchronous>, transform_indices = @transform_5, window_bounds = array<i64: 512, 128>}, {pipeline_mode = #tpu.pipeline_mode<synchronous>, transform_indices = @transform_6, window_bounds = array<i64: 128, 128>}, {pipeline_mode = #tpu.pipeline_mode<synchronous>, transform_indices = @transform_7, window_bounds = array<i64: 128, 8>}, {pipeline_mode = #tpu.pipeline_mode<synchronous>, transform_indices = @transform_8, window_bounds = array<i64: 8, 128>}, {transform_indices = @transform_9, window_bounds = array<i64: 4>}, {transform_indices = @transform_10, window_bounds = array<i64: 8, 40>}]} {
    %c0 = arith.constant 0 : index
    %c0_0 = arith.constant 0 : index
    %0 = vector.load %arg1[%c0, %c0_0] : memref<8x24xf32, #tpu.memory_space<vmem>>, vector<8x24xf32>
    %c0_1 = arith.constant 0 : index
    %c0_2 = arith.constant 0 : index
    %1 = vector.load %arg9[%c0_1, %c0_2] : memref<8x128xf32, #tpu.memory_space<vmem>>, vector<8x128xf32>
    %2 = vector.extract_strided_slice %1 {offsets = [0, 0], sizes = [1, 24], strides = [1, 1]} : vector<8x128xf32> to vector<1x24xf32>
    %3 = vector.extract_strided_slice %1 {offsets = [1, 0], sizes = [1, 24], strides = [1, 1]} : vector<8x128xf32> to vector<1x24xf32>
    %4 = vector.extract_strided_slice %1 {offsets = [2, 0], sizes = [1, 24], strides = [1, 1]} : vector<8x128xf32> to vector<1x24xf32>
    %5 = vector.extract_strided_slice %1 {offsets = [3, 0], sizes = [1, 128], strides = [1, 1]} : vector<8x128xf32> to vector<1x128xf32>
    %6 = vector.extract_strided_slice %1 {offsets = [4, 0], sizes = [1, 128], strides = [1, 1]} : vector<8x128xf32> to vector<1x128xf32>
    %7 = vector.extract_strided_slice %1 {offsets = [5, 0], sizes = [1, 8], strides = [1, 1]} : vector<8x128xf32> to vector<1x8xf32>
    %8 = arith.truncf %0 : vector<8x24xf32> to vector<8x24xbf16>
    %c0_3 = arith.constant 0 : index
    %c0_4 = arith.constant 0 : index
    %9 = vector.load %arg2[%c0_3, %c0_4] : memref<24x280xbf16, #tpu.memory_space<vmem>>, vector<24x280xbf16>
    %cst = arith.constant dense<0.000000e+00> : vector<8x280xf32>
    %10 = tpu.matmul %8, %9, %cst {dimension_numbers = #tpu.dot_dimension_numbers<[1], [0], [0], [1], [0, 0, 1, 1], [], []>} : vector<8x24xbf16>, vector<24x280xbf16>, vector<8x280xf32> -> vector<8x280xf32>
    %11 = vector.extract_strided_slice %10 {offsets = [0, 0], sizes = [8, 128], strides = [1, 1]} : vector<8x280xf32> to vector<8x128xf32>
    %12 = vector.extract_strided_slice %10 {offsets = [0, 128], sizes = [8, 128], strides = [1, 1]} : vector<8x280xf32> to vector<8x128xf32>
    %13 = arith.mulf %11, %12 : vector<8x128xf32>
    %14 = vector.extract_strided_slice %10 {offsets = [0, 256], sizes = [8, 24], strides = [1, 1]} : vector<8x280xf32> to vector<8x24xf32>
    %15 = vector.broadcast %2 : vector<1x24xf32> to vector<8x24xf32>
    %16 = arith.addf %14, %15 : vector<8x24xf32>
    %cst_5 = arith.constant 0.000000e+00 : f32
    %17 = vector.broadcast %cst_5 : f32 to vector<8x24xf32>
    %18 = arith.maximumf %16, %17 : vector<8x24xf32>
    %19 = arith.truncf %13 : vector<8x128xf32> to vector<8x128xbf16>
    %c0_6 = arith.constant 0 : index
    %c0_7 = arith.constant 0 : index
    %20 = vector.load %arg3[%c0_6, %c0_7] : memref<128x24xbf16, #tpu.memory_space<vmem>>, vector<128x24xbf16>
    %cst_8 = arith.constant dense<0.000000e+00> : vector<8x24xf32>
    %21 = tpu.matmul %19, %20, %cst_8 {dimension_numbers = #tpu.dot_dimension_numbers<[1], [0], [0], [1], [0, 0, 1, 1], [], []>} : vector<8x128xbf16>, vector<128x24xbf16>, vector<8x24xf32> -> vector<8x24xf32>
    %22 = vector.broadcast %3 : vector<1x24xf32> to vector<8x24xf32>
    %23 = arith.addf %21, %22 : vector<8x24xf32>
    %cst_9 = arith.constant 5.000000e-01 : f32
    %24 = vector.broadcast %cst_9 : f32 to vector<8x24xf32>
    %25 = arith.mulf %24, %23 : vector<8x24xf32>
    %26 = math.tanh %25 : vector<8x24xf32>
    %cst_10 = arith.constant 5.000000e-01 : f32
    %27 = vector.broadcast %cst_10 : f32 to vector<8x24xf32>
    %28 = arith.mulf %27, %26 : vector<8x24xf32>
    %cst_11 = arith.constant 5.000000e-01 : f32
    %29 = vector.broadcast %cst_11 : f32 to vector<8x24xf32>
    %30 = arith.addf %28, %29 : vector<8x24xf32>
    %31 = arith.mulf %30, %18 : vector<8x24xf32>
    %32 = arith.truncf %31 : vector<8x24xf32> to vector<8x24xbf16>
    %c0_12 = arith.constant 0 : index
    %c0_13 = arith.constant 0 : index
    %33 = vector.load %arg4[%c0_12, %c0_13] : memref<24x24xbf16, #tpu.memory_space<vmem>>, vector<24x24xbf16>
    %cst_14 = arith.constant dense<0.000000e+00> : vector<8x24xf32>
    %34 = tpu.matmul %32, %33, %cst_14 {dimension_numbers = #tpu.dot_dimension_numbers<[1], [0], [0], [1], [0, 0, 1, 1], [], []>} : vector<8x24xbf16>, vector<24x24xbf16>, vector<8x24xf32> -> vector<8x24xf32>
    %35 = vector.broadcast %4 : vector<1x24xf32> to vector<8x24xf32>
    %36 = arith.addf %34, %35 : vector<8x24xf32>
    %cst_15 = arith.constant 0.000000e+00 : f32
    %37 = vector.broadcast %cst_15 : f32 to vector<8x24xf32>
    %38 = arith.maximumf %36, %37 : vector<8x24xf32>
    %39 = arith.truncf %38 : vector<8x24xf32> to vector<8x24xbf16>
    %c0_16 = arith.constant 0 : index
    %c0_17 = arith.constant 0 : index
    %40 = vector.load %arg5[%c0_16, %c0_17] : memref<24x1664xbf16, #tpu.memory_space<vmem>>, vector<24x1664xbf16>
    %cst_18 = arith.constant dense<0.000000e+00> : vector<8x1664xf32>
    %41 = tpu.matmul %39, %40, %cst_18 {dimension_numbers = #tpu.dot_dimension_numbers<[1], [0], [0], [1], [0, 0, 1, 1], [], []>} : vector<8x24xbf16>, vector<24x1664xbf16>, vector<8x1664xf32> -> vector<8x1664xf32>
    %42 = vector.extract_strided_slice %41 {offsets = [0, 0], sizes = [8, 512], strides = [1, 1]} : vector<8x1664xf32> to vector<8x512xf32>
    %43 = vector.extract_strided_slice %41 {offsets = [0, 512], sizes = [8, 512], strides = [1, 1]} : vector<8x1664xf32> to vector<8x512xf32>
    %44 = arith.mulf %42, %43 : vector<8x512xf32>
    %45 = vector.extract_strided_slice %41 {offsets = [0, 1024], sizes = [8, 512], strides = [1, 1]} : vector<8x1664xf32> to vector<8x512xf32>
    %46 = arith.mulf %44, %45 : vector<8x512xf32>
    %47 = vector.extract_strided_slice %41 {offsets = [0, 1536], sizes = [8, 128], strides = [1, 1]} : vector<8x1664xf32> to vector<8x128xf32>
    %48 = arith.truncf %46 : vector<8x512xf32> to vector<8x512xbf16>
    %c0_19 = arith.constant 0 : index
    %c0_20 = arith.constant 0 : index
    %49 = vector.load %arg6[%c0_19, %c0_20] : memref<512x128xbf16, #tpu.memory_space<vmem>>, vector<512x128xbf16>
    %cst_21 = arith.constant dense<0.000000e+00> : vector<8x128xf32>
    %50 = tpu.matmul %48, %49, %cst_21 {dimension_numbers = #tpu.dot_dimension_numbers<[1], [0], [0], [1], [0, 0, 1, 1], [], []>} : vector<8x512xbf16>, vector<512x128xbf16>, vector<8x128xf32> -> vector<8x128xf32>
    %51 = vector.broadcast %5 : vector<1x128xf32> to vector<8x128xf32>
    %52 = arith.addf %50, %51 : vector<8x128xf32>
    %cst_22 = arith.constant 0.000000e+00 : f32
    %53 = vector.broadcast %cst_22 : f32 to vector<8x128xf32>
    %54 = arith.maximumf %52, %53 : vector<8x128xf32>
    %55 = arith.truncf %54 : vector<8x128xf32> to vector<8x128xbf16>
    %c0_23 = arith.constant 0 : index
    %c0_24 = arith.constant 0 : index
    %56 = vector.load %arg7[%c0_23, %c0_24] : memref<128x128xbf16, #tpu.memory_space<vmem>>, vector<128x128xbf16>
    %cst_25 = arith.constant dense<0.000000e+00> : vector<8x128xf32>
    %57 = tpu.matmul %55, %56, %cst_25 {dimension_numbers = #tpu.dot_dimension_numbers<[1], [0], [0], [1], [0, 0, 1, 1], [], []>} : vector<8x128xbf16>, vector<128x128xbf16>, vector<8x128xf32> -> vector<8x128xf32>
    %58 = arith.addf %57, %47 : vector<8x128xf32>
    %59 = vector.broadcast %6 : vector<1x128xf32> to vector<8x128xf32>
    %60 = arith.addf %58, %59 : vector<8x128xf32>
    %cst_26 = arith.constant 0.000000e+00 : f32
    %61 = vector.broadcast %cst_26 : f32 to vector<8x128xf32>
    %62 = arith.maximumf %60, %61 : vector<8x128xf32>
    %63 = arith.truncf %62 : vector<8x128xf32> to vector<8x128xbf16>
    %c0_27 = arith.constant 0 : index
    %c0_28 = arith.constant 0 : index
    %64 = vector.load %arg8[%c0_27, %c0_28] : memref<128x8xbf16, #tpu.memory_space<vmem>>, vector<128x8xbf16>
    %cst_29 = arith.constant dense<0.000000e+00> : vector<8x8xf32>
    %65 = tpu.matmul %63, %64, %cst_29 {dimension_numbers = #tpu.dot_dimension_numbers<[1], [0], [0], [1], [0, 0, 1, 1], [], []>} : vector<8x128xbf16>, vector<128x8xbf16>, vector<8x8xf32> -> vector<8x8xf32>
    %66 = vector.broadcast %7 : vector<1x8xf32> to vector<8x8xf32>
    %67 = arith.addf %65, %66 : vector<8x8xf32>
    %68 = tpu.iota {dimensions = array<i32: 1>} : vector<8x8xi32>
    %c7_i32 = arith.constant 7 : i32
    %69 = vector.broadcast %c7_i32 : i32 to vector<8x8xi32>
    %70 = arith.cmpi slt, %68, %69 : vector<8x8xi32>
    %cst_30 = arith.constant -1.000000e+30 : f32
    %71 = vector.broadcast %cst_30 : f32 to vector<8x8xf32>
    %72 = arith.select %70, %67, %71 : vector<8x8xi1>, vector<8x8xf32>
    %cst_31 = arith.constant dense<0xFF800000> : vector<8xf32>
    %73 = vector.multi_reduction <maximumf>, %72, %cst_31 [1] : vector<8x8xf32> to vector<8xf32>
    %74 = vector.shape_cast %73 : vector<8xf32> to vector<8x1xf32>
    %75 = vector.broadcast %74 : vector<8x1xf32> to vector<8x8xf32>
    %76 = arith.subf %72, %75 : vector<8x8xf32>
    %77 = math.exp %76 : vector<8x8xf32>
    %cst_32 = arith.constant 0.000000e+00 : f32
    %78 = vector.broadcast %cst_32 : f32 to vector<8x8xf32>
    %79 = arith.select %70, %77, %78 : vector<8x8xi1>, vector<8x8xf32>
    %cst_33 = arith.constant dense<0.000000e+00> : vector<8xf32>
    %80 = vector.multi_reduction <add>, %79, %cst_33 [1] : vector<8x8xf32> to vector<8xf32>
    %81 = vector.shape_cast %80 : vector<8xf32> to vector<8x1xf32>
    %82 = math.log %81 : vector<8x1xf32>
    %83 = vector.broadcast %82 : vector<8x1xf32> to vector<8x8xf32>
    %84 = arith.subf %76, %83 : vector<8x8xf32>
    %cst_34 = arith.constant 0.000000e+00 : f32
    %85 = vector.broadcast %cst_34 : f32 to vector<8x8xf32>
    %86 = arith.select %70, %84, %85 : vector<8x8xi1>, vector<8x8xf32>
    %c0_35 = arith.constant 0 : index
    %87 = memref.load %arg10[%c0_35] : memref<4xf32, #tpu.memory_space<smem>>
    %88 = vector.extract_strided_slice %0 {offsets = [0, 0], sizes = [8, 8], strides = [1, 1]} : vector<8x24xf32> to vector<8x8xf32>
    %89 = vector.broadcast %87 : f32 to vector<8x8xf32>
    %90 = arith.mulf %89, %88 : vector<8x8xf32>
    %c1 = arith.constant 1 : index
    %91 = memref.load %arg10[%c1] : memref<4xf32, #tpu.memory_space<smem>>
    %92 = vector.extract_strided_slice %0 {offsets = [0, 8], sizes = [8, 8], strides = [1, 1]} : vector<8x24xf32> to vector<8x8xf32>
    %93 = vector.broadcast %91 : f32 to vector<8x8xf32>
    %94 = arith.mulf %93, %92 : vector<8x8xf32>
    %95 = arith.addf %90, %94 : vector<8x8xf32>
    %c2 = arith.constant 2 : index
    %96 = memref.load %arg10[%c2] : memref<4xf32, #tpu.memory_space<smem>>
    %97 = vector.extract_strided_slice %0 {offsets = [0, 16], sizes = [8, 8], strides = [1, 1]} : vector<8x24xf32> to vector<8x8xf32>
    %98 = vector.broadcast %96 : f32 to vector<8x8xf32>
    %99 = arith.mulf %98, %97 : vector<8x8xf32>
    %100 = arith.addf %95, %99 : vector<8x8xf32>
    %c3 = arith.constant 3 : index
    %101 = memref.load %arg10[%c3] : memref<4xf32, #tpu.memory_space<smem>>
    %102 = vector.broadcast %101 : f32 to vector<8x8xf32>
    %103 = arith.mulf %102, %86 : vector<8x8xf32>
    %104 = arith.addf %100, %103 : vector<8x8xf32>
    %c0_36 = arith.constant 0 : index
    %c0_37 = arith.constant 0 : index
    %105 = vector.load %arg11[%c0_36, %c0_37] : memref<8x40xf32, #tpu.memory_space<vmem>>, vector<8x8xf32>
    tpu.vector_store %arg11[%c0_36, %c0_37], %104 {strides = array<i32>} : memref<8x40xf32, #tpu.memory_space<vmem>>, vector<8x8xf32>,
    %c0_38 = arith.constant 0 : index
    %c8 = arith.constant 8 : index
    %106 = vector.load %arg11[%c0_38, %c8] : memref<8x40xf32, #tpu.memory_space<vmem>>, vector<8x8xf32>
    tpu.vector_store %arg11[%c0_38, %c8], %86 {strides = array<i32>} : memref<8x40xf32, #tpu.memory_space<vmem>>, vector<8x8xf32>,
    %c0_39 = arith.constant 0 : index
    %c16 = arith.constant 16 : index
    %107 = vector.load %arg11[%c0_39, %c16] : memref<8x40xf32, #tpu.memory_space<vmem>>, vector<8x24xf32>
    tpu.vector_store %arg11[%c0_39, %c16], %23 {strides = array<i32>} : memref<8x40xf32, #tpu.memory_space<vmem>>, vector<8x24xf32>,
    return
  }
  func.func @transform_0(%arg0: i32) -> (i32, i32) {
    %c0_i32 = arith.constant 0 : i32
    %c0_i32_0 = arith.constant 0 : i32
    return %arg0, %c0_i32 : i32, i32
  }
  func.func @transform_1(%arg0: i32) -> (i32, i32) {
    %c0_i32 = arith.constant 0 : i32
    %c0_i32_0 = arith.constant 0 : i32
    %c0_i32_1 = arith.constant 0 : i32
    return %c0_i32, %c0_i32_0 : i32, i32
  }
  func.func @transform_2(%arg0: i32) -> (i32, i32) {
    %c0_i32 = arith.constant 0 : i32
    %c0_i32_0 = arith.constant 0 : i32
    %c0_i32_1 = arith.constant 0 : i32
    return %c0_i32, %c0_i32_0 : i32, i32
  }
  func.func @transform_3(%arg0: i32) -> (i32, i32) {
    %c0_i32 = arith.constant 0 : i32
    %c0_i32_0 = arith.constant 0 : i32
    %c0_i32_1 = arith.constant 0 : i32
    return %c0_i32, %c0_i32_0 : i32, i32
  }
  func.func @transform_4(%arg0: i32) -> (i32, i32) {
    %c0_i32 = arith.constant 0 : i32
    %c0_i32_0 = arith.constant 0 : i32
    %c0_i32_1 = arith.constant 0 : i32
    return %c0_i32, %c0_i32_0 : i32, i32
  }
  func.func @transform_5(%arg0: i32) -> (i32, i32) {
    %c0_i32 = arith.constant 0 : i32
    %c0_i32_0 = arith.constant 0 : i32
    %c0_i32_1 = arith.constant 0 : i32
    return %c0_i32, %c0_i32_0 : i32, i32
  }
  func.func @transform_6(%arg0: i32) -> (i32, i32) {
    %c0_i32 = arith.constant 0 : i32
    %c0_i32_0 = arith.constant 0 : i32
    %c0_i32_1 = arith.constant 0 : i32
    return %c0_i32, %c0_i32_0 : i32, i32
  }
  func.func @transform_7(%arg0: i32) -> (i32, i32) {
    %c0_i32 = arith.constant 0 : i32
    %c0_i32_0 = arith.constant 0 : i32
    %c0_i32_1 = arith.constant 0 : i32
    return %c0_i32, %c0_i32_0 : i32, i32
  }
  func.func @transform_8(%arg0: i32) -> (i32, i32) {
    %c0_i32 = arith.constant 0 : i32
    %c0_i32_0 = arith.constant 0 : i32
    %c0_i32_1 = arith.constant 0 : i32
    return %c0_i32, %c0_i32_0 : i32, i32
  }
  func.func @transform_9(%arg0: i32) -> i32 {
    %c0_i32 = arith.constant 0 : i32
    %c0_i32_0 = arith.constant 0 : i32
    return %c0_i32 : i32
  }
  func.func @transform_10(%arg0: i32) -> (i32, i32) {
    %c0_i32 = arith.constant 0 : i32
    %c0_i32_0 = arith.constant 0 : i32
    return %arg0, %c0_i32 : i32, i32
  }
}

</mosaic_0001>

<llo_original>
// kernel: tpu_custom_call.1
$region0: #{tpu_custom_call.1}
  #allocation0 [shape = 'u32[]', space=smem, size = 0x4, offset = 0x4, fixed_abs, tag = 'smem constant byte address 0x4 - core index']
  #allocation1 [shape = 'u32[72,128]{1,0:T(1,128)}', space=vmem, size = 0x9000, scoped, tag = 'internal scratch']
  %s0 = inlined_call_operand.vmem [shape: f32[16,24], index: 0, kind: input, shape index: {}]
  %s1 = inlined_call_operand.vmem [shape: bf16[24,280], index: 1, kind: input, shape index: {}]
  %s2 = inlined_call_operand.vmem [shape: bf16[128,24], index: 2, kind: input, shape index: {}]
  %s3 = inlined_call_operand.vmem [shape: bf16[24,24], index: 3, kind: input, shape index: {}]
  %s4 = inlined_call_operand.hbm [shape: bf16[24,1664], index: 4, kind: input, shape index: {}]
  %s5 = inlined_call_operand.hbm [shape: bf16[512,128], index: 5, kind: input, shape index: {}]
  %s6 = inlined_call_operand.vmem [shape: bf16[128,128], index: 6, kind: input, shape index: {}]
  %s7 = inlined_call_operand.vmem [shape: bf16[128,8], index: 7, kind: input, shape index: {}]
  %s8 = inlined_call_operand.vmem [shape: f32[8,128], index: 8, kind: input, shape index: {}]
  %s9 = inlined_call_operand.vmem [shape: f32[4], index: 9, kind: input, shape index: {}]
  %s10 = inlined_call_operand.hbm [shape: f32[16,40], index: 10, kind: output, shape index: {}]
  %s11 = sld [smem:[#allocation0]]
  $region85: #{tpu_custom_call.1} parent=0
    _
  %s13 = ssub.s32 1, %s11
  %s14 = scalar_select 0, %s13, %s11
  $region1: #{tpu_custom_call.1} parent=0
    #allocation2 [shape = 'u8[79872]{0}', space=vmem, size = 0x13800, scoped, tag = 'input window, operand 4, single buffered']
    #allocation3 [shape = 's32[2]{0}', space=sflag, size = 0x8, scoped, tag = 'scoped memory for tpu_custom_call.1']
    #allocation4 [shape = 's32[2]{0}', space=sflag, size = 0x8, scoped, tag = 'scoped memory for tpu_custom_call.1']
    #allocation5 [shape = 's32[2]{0}', space=sflag, size = 0x8, scoped, tag = 'scoped memory for tpu_custom_call.1']
    #allocation6 [shape = 'u8[131072]{0}', space=vmem, size = 0x20000, scoped, tag = 'input window, operand 5, single buffered']
    #allocation7 [shape = 's32[1]{0}', space=sflag, size = 0x4, scoped, tag = 'scoped memory for tpu_custom_call.1']
    #allocation8 [shape = 'u8[512]{0}', space=smem, size = 0x200, scoped, tag = 'input window, operand 9, single buffered']
    #allocation9 [shape = 'u8[8192]{0}', space=vmem, size = 0x2000, scoped, tag = 'output window, operand 0']
    %15 = vsyncpa [#allocation3], 0
    %16 = vsyncpa [#allocation7], 0
    %17 = vsyncpa [#allocation5], 0
    %18 = vsyncpa [#allocation4], 0
    %s19 = scalar_lea.sflag [#allocation4], 1
    %20 = vsyncpa %s19, 0
    loop: start=0, step=1, limit=4
    $region2: #{tpu_custom_call.1} parent=1 // loop_pre_header
      _
    $region3: #{tpu_custom_call.1} parent=1 // loop_header
      %s22 = sphi 0, %s26
      %p23 = scmp.ge.s32.totalorder %s22, 4
      %s32 = sphi 0, %s34
      %s35 = sphi 0, %s32
      %s36 = sphi 0, %s35
      %s52 = sphi 0, %s36
      %s56 = sphi 0, %s56
      %s58 = sphi 0, %s56
      %s59 = sphi 0, %s58
      %s73 = sphi 0, %s59
      %s77 = sphi 0, %s77
      %s79 = sphi 0, %s77
      %s80 = sphi 0, %s79
      %s94 = sphi 0, %s80
      %s98 = sphi 0, %s98
      %s100 = sphi 0, %s98
      %s101 = sphi 0, %s100
      %s115 = sphi 0, %s101
      %s119 = sphi 0, %s119
      %s121 = sphi 0, %s119
      %s122 = sphi 0, %s121
      %s136 = sphi 0, %s122
      %s140 = sphi 0, %s140
      %s142 = sphi 0, %s140
      %s143 = sphi 0, %s142
      %s157 = sphi 0, %s143
      %s161 = sphi 0, %s161
      %s163 = sphi 0, %s161
      %s164 = sphi 0, %s163
      %s178 = sphi 0, %s164
      %s182 = sphi 0, %s182
      %s184 = sphi 0, %s182
      %s185 = sphi 0, %s184
      %s199 = sphi 0, %s185
      %s203 = sphi 0, %s203
      %s205 = sphi 0, %s203
      %s206 = sphi 0, %s205
      %s220 = sphi 0, %s206
      %s224 = sphi 0, %s224
      %s226 = sphi 0, %s224
      %s227 = sphi 0, %s226
      %s241 = sphi 0, %s227
      %s247 = sphi 0, %s249
      %s250 = sphi 0, %s247
      %s251 = sphi 0, %s250
      %s267 = sphi 0, %s251
    $region4: #{tpu_custom_call.1} parent=1 // loop_header_branch
      %25 = sbr.rel (%p23) target = $region8
    $region5: #{tpu_custom_call.1} parent=1 // loop_body
      %s27 = ssub.s32 %s22, 1
      %s28 = ssub.s32 %s22, 2
      %s29 = sadd.s32 %s22, 1
      %s30 = ssub.s32 %s22, %s29
      %p31 = scmp.eq.s32.totalorder %s30, 0
      %s33 = sadd.s32 %s32, 1
      %s34 = scalar_select %p31, %s32, %s33
      %p37 = pneg %p31
      %p38 = scmp.eq.s32.totalorder %s22, 1
      %p39 = por %p37, %p38
      %p40 = scmp.ne.s32.totalorder %s32, %s35
      %p41 = scmp.eq.s32.totalorder %s22, 0
      %p42 = por %p40, %p41
      %p43 = scmp.ne.s32.totalorder %s32, %s35
      %p44 = scmp.eq.s32.totalorder %s27, 1
      %p45 = por %p43, %p44
      %p46 = scmp.ne.s32.totalorder %s35, %s36
      %p47 = scmp.eq.s32.totalorder %s27, 0
      %p48 = por %p46, %p47
      %p49 = scmp.ne.s32.totalorder %s35, %s36
      %p50 = scmp.eq.s32.totalorder %s28, 1
      %p51 = por %p49, %p50
      %p53 = scmp.ne.s32.totalorder %s36, %s52
      %p54 = scmp.eq.s32.totalorder %s28, 0
      %p55 = por %p53, %p54
      %s57 = sadd.s32 %s56, 1
      %p60 = scmp.eq.s32.totalorder %s22, 1
      %p61 = scmp.ne.s32.totalorder %s56, %s58
      %p62 = scmp.eq.s32.totalorder %s22, 0
      %p63 = por %p61, %p62
      %p64 = scmp.ne.s32.totalorder %s56, %s58
      %p65 = scmp.eq.s32.totalorder %s27, 1
      %p66 = por %p64, %p65
      %p67 = scmp.ne.s32.totalorder %s58, %s59
      %p68 = scmp.eq.s32.totalorder %s27, 0
      %p69 = por %p67, %p68
      %p70 = scmp.ne.s32.totalorder %s58, %s59
      %p71 = scmp.eq.s32.totalorder %s28, 1
      %p72 = por %p70, %p71
      %p74 = scmp.ne.s32.totalorder %s59, %s73
      %p75 = scmp.eq.s32.totalorder %s28, 0
      %p76 = por %p74, %p75
      %s78 = sadd.s32 %s77, 1
      %p81 = scmp.eq.s32.totalorder %s22, 1
      %p82 = scmp.ne.s32.totalorder %s77, %s79
      %p83 = scmp.eq.s32.totalorder %s22, 0
      %p84 = por %p82, %p83
      %p85 = scmp.ne.s32.totalorder %s77, %s79
      %p86 = scmp.eq.s32.totalorder %s27, 1
      %p87 = por %p85, %p86
      %p88 = scmp.ne.s32.totalorder %s79, %s80
      %p89 = scmp.eq.s32.totalorder %s27, 0
      %p90 = por %p88, %p89
      %p91 = scmp.ne.s32.totalorder %s79, %s80
      %p92 = scmp.eq.s32.totalorder %s28, 1
      %p93 = por %p91, %p92
      %p95 = scmp.ne.s32.totalorder %s80, %s94
      %p96 = scmp.eq.s32.totalorder %s28, 0
      %p97 = por %p95, %p96
      %s99 = sadd.s32 %s98, 1
      %p102 = scmp.eq.s32.totalorder %s22, 1
      %p103 = scmp.ne.s32.totalorder %s98, %s100
      %p104 = scmp.eq.s32.totalorder %s22, 0
      %p105 = por %p103, %p104
      %p106 = scmp.ne.s32.totalorder %s98, %s100
      %p107 = scmp.eq.s32.totalorder %s27, 1
      %p108 = por %p106, %p107
      %p109 = scmp.ne.s32.totalorder %s100, %s101
      %p110 = scmp.eq.s32.totalorder %s27, 0
      %p111 = por %p109, %p110
      %p112 = scmp.ne.s32.totalorder %s100, %s101
      %p113 = scmp.eq.s32.totalorder %s28, 1
      %p114 = por %p112, %p113
      %p116 = scmp.ne.s32.totalorder %s101, %s115
      %p117 = scmp.eq.s32.totalorder %s28, 0
      %p118 = por %p116, %p117
      %s120 = sadd.s32 %s119, 1
      %p123 = scmp.eq.s32.totalorder %s22, 1
      %p124 = scmp.ne.s32.totalorder %s119, %s121
      %p125 = scmp.eq.s32.totalorder %s22, 0
      %p126 = por %p124, %p125
      %p127 = scmp.ne.s32.totalorder %s119, %s121
      %p128 = scmp.eq.s32.totalorder %s27, 1
      %p129 = por %p127, %p128
      %p130 = scmp.ne.s32.totalorder %s121, %s122
      %p131 = scmp.eq.s32.totalorder %s27, 0
      %p132 = por %p130, %p131
      %p133 = scmp.ne.s32.totalorder %s121, %s122
      %p134 = scmp.eq.s32.totalorder %s28, 1
      %p135 = por %p133, %p134
      %p137 = scmp.ne.s32.totalorder %s122, %s136
      %p138 = scmp.eq.s32.totalorder %s28, 0
      %p139 = por %p137, %p138
      %s141 = sadd.s32 %s140, 1
      %p144 = scmp.eq.s32.totalorder %s22, 1
      %p145 = scmp.ne.s32.totalorder %s140, %s142
      %p146 = scmp.eq.s32.totalorder %s22, 0
      %p147 = por %p145, %p146
      %p148 = scmp.ne.s32.totalorder %s140, %s142
      %p149 = scmp.eq.s32.totalorder %s27, 1
      %p150 = por %p148, %p149
      %p151 = scmp.ne.s32.totalorder %s142, %s143
      %p152 = scmp.eq.s32.totalorder %s27, 0
      %p153 = por %p151, %p152
      %p154 = scmp.ne.s32.totalorder %s142, %s143
      %p155 = scmp.eq.s32.totalorder %s28, 1
      %p156 = por %p154, %p155
      %p158 = scmp.ne.s32.totalorder %s143, %s157
      %p159 = scmp.eq.s32.totalorder %s28, 0
      %p160 = por %p158, %p159
      %s162 = sadd.s32 %s161, 1
      %p165 = scmp.eq.s32.totalorder %s22, 1
      %p166 = scmp.ne.s32.totalorder %s161, %s163
      %p167 = scmp.eq.s32.totalorder %s22, 0
      %p168 = por %p166, %p167
      %p169 = scmp.ne.s32.totalorder %s161, %s163
      %p170 = scmp.eq.s32.totalorder %s27, 1
      %p171 = por %p169, %p170
      %p172 = scmp.ne.s32.totalorder %s163, %s164
      %p173 = scmp.eq.s32.totalorder %s27, 0
      %p174 = por %p172, %p173
      %p175 = scmp.ne.s32.totalorder %s163, %s164
      %p176 = scmp.eq.s32.totalorder %s28, 1
      %p177 = por %p175, %p176
      %p179 = scmp.ne.s32.totalorder %s164, %s178
      %p180 = scmp.eq.s32.totalorder %s28, 0
      %p181 = por %p179, %p180
      %s183 = sadd.s32 %s182, 1
      %p186 = scmp.eq.s32.totalorder %s22, 1
      %p187 = scmp.ne.s32.totalorder %s182, %s184
      %p188 = scmp.eq.s32.totalorder %s22, 0
      %p189 = por %p187, %p188
      %p190 = scmp.ne.s32.totalorder %s182, %s184
      %p191 = scmp.eq.s32.totalorder %s27, 1
      %p192 = por %p190, %p191
      %p193 = scmp.ne.s32.totalorder %s184, %s185
      %p194 = scmp.eq.s32.totalorder %s27, 0
      %p195 = por %p193, %p194
      %p196 = scmp.ne.s32.totalorder %s184, %s185
      %p197 = scmp.eq.s32.totalorder %s28, 1
      %p198 = por %p196, %p197
      %p200 = scmp.ne.s32.totalorder %s185, %s199
      %p201 = scmp.eq.s32.totalorder %s28, 0
      %p202 = por %p200, %p201
      %s204 = sadd.s32 %s203, 1
      %p207 = scmp.eq.s32.totalorder %s22, 1
      %p208 = scmp.ne.s32.totalorder %s203, %s205
      %p209 = scmp.eq.s32.totalorder %s22, 0
      %p210 = por %p208, %p209
      %p211 = scmp.ne.s32.totalorder %s203, %s205
      %p212 = scmp.eq.s32.totalorder %s27, 1
      %p213 = por %p211, %p212
      %p214 = scmp.ne.s32.totalorder %s205, %s206
      %p215 = scmp.eq.s32.totalorder %s27, 0
      %p216 = por %p214, %p215
      %p217 = scmp.ne.s32.totalorder %s205, %s206
      %p218 = scmp.eq.s32.totalorder %s28, 1
      %p219 = por %p217, %p218
      %p221 = scmp.ne.s32.totalorder %s206, %s220
      %p222 = scmp.eq.s32.totalorder %s28, 0
      %p223 = por %p221, %p222
      %s225 = sadd.s32 %s224, 1
      %p228 = scmp.eq.s32.totalorder %s22, 1
      %p229 = scmp.ne.s32.totalorder %s224, %s226
      %p230 = scmp.eq.s32.totalorder %s22, 0
      %p231 = por %p229, %p230
      %p232 = scmp.ne.s32.totalorder %s224, %s226
      %p233 = scmp.eq.s32.totalorder %s27, 1
      %p234 = por %p232, %p233
      %p235 = scmp.ne.s32.totalorder %s226, %s227
      %p236 = scmp.eq.s32.totalorder %s27, 0
      %p237 = por %p235, %p236
      %p238 = scmp.ne.s32.totalorder %s226, %s227
      %p239 = scmp.eq.s32.totalorder %s28, 1
      %p240 = por %p238, %p239
      %p242 = scmp.ne.s32.totalorder %s227, %s241
      %p243 = scmp.eq.s32.totalorder %s28, 0
      %p244 = por %p242, %p243
      %s245 = ssub.s32 %s22, %s29
      %p246 = scmp.eq.s32.totalorder %s245, 0
      %s248 = sadd.s32 %s247, 1
      %s249 = scalar_select %p246, %s247, %s248
      %p252 = pneg %p246
      %p253 = scmp.eq.s32.totalorder %s22, 1
      %p254 = por %p252, %p253
      %p255 = scmp.ne.s32.totalorder %s247, %s250
      %p256 = scmp.eq.s32.totalorder %s22, 0
      %p257 = por %p255, %p256
      %p258 = scmp.ne.s32.totalorder %s247, %s250
      %p259 = scmp.eq.s32.totalorder %s27, 1
      %p260 = por %p258, %p259
      %p261 = scmp.ne.s32.totalorder %s250, %s251
      %p262 = scmp.eq.s32.totalorder %s27, 0
      %p263 = por %p261, %p262
      %p264 = scmp.ne.s32.totalorder %s250, %s251
      %p265 = scmp.eq.s32.totalorder %s28, 1
      %p266 = por %p264, %p265
      %p268 = scmp.ne.s32.totalorder %s251, %s267
      %p269 = scmp.eq.s32.totalorder %s28, 0
      %p270 = por %p268, %p269
      %p271 = scmp.le.s32.totalorder 1, %s22
      %p272 = scmp.lt.s32.totalorder %s22, 3
      %p273 = pnand %p271, %p272
      %p274 = pneg %p273
      // Predicated region
      $region9: #{tpu_custom_call.1} parent=5 // pred_check
        _
      $region10: #{tpu_custom_call.1} parent=5 // pred_check_branch
        %276 = sbr.rel (%p273) target = $region12
      $region11: #{tpu_custom_call.1} parent=5 // pred_region
        %s277 = ssub.s32 %s22, 1
        // Predicated region
        $region13: #{tpu_custom_call.1} parent=11 // pred_check
          %p278 = pneg %p69
        $region14: #{tpu_custom_call.1} parent=11 // pred_check_branch
          %280 = sbr.rel (%p278) target = $region16
        $region15: #{tpu_custom_call.1} parent=11 // pred_region
          _
        $region16: #{tpu_custom_call.1} parent=11 // pred_fallthru
          _
        // Predicated region
        $region17: #{tpu_custom_call.1} parent=11 // pred_check
          %p281 = pneg %p90
        $region18: #{tpu_custom_call.1} parent=11 // pred_check_branch
          %283 = sbr.rel (%p281) target = $region20
        $region19: #{tpu_custom_call.1} parent=11 // pred_region
          _
        $region20: #{tpu_custom_call.1} parent=11 // pred_fallthru
          _
        // Predicated region
        $region21: #{tpu_custom_call.1} parent=11 // pred_check
          %p284 = pneg %p111
        $region22: #{tpu_custom_call.1} parent=11 // pred_check_branch
          %286 = sbr.rel (%p284) target = $region24
        $region23: #{tpu_custom_call.1} parent=11 // pred_region
          _
        $region24: #{tpu_custom_call.1} parent=11 // pred_fallthru
          _
        // Predicated region
        $region25: #{tpu_custom_call.1} parent=11 // pred_check
          %p287 = pneg %p132
        $region26: #{tpu_custom_call.1} parent=11 // pred_check_branch
          %289 = sbr.rel (%p287) target = $region28
        $region27: #{tpu_custom_call.1} parent=11 // pred_region
          %291 = vsyncadd [#allocation3], 0
          %s292 = sshll.u32 %s4, 4
          %s293 = int_to_ptr.hbm [resolvable:$true] %s292
          %s294 = sshll.u32 [#allocation2], 4
          %s295 = int_to_ptr.vmem [resolvable:$true] %s294
          %300 = dma.hbm_to_vmem [thread:$0]  %s293, 2496, %s295, [#allocation3], 832, 832, 52
        $region28: #{tpu_custom_call.1} parent=11 // pred_fallthru
          _
        // Predicated region
        $region29: #{tpu_custom_call.1} parent=11 // pred_check
          %p301 = pneg %p153
        $region30: #{tpu_custom_call.1} parent=11 // pred_check_branch
          %303 = sbr.rel (%p301) target = $region32
        $region31: #{tpu_custom_call.1} parent=11 // pred_region
          %305 = vsyncadd [#allocation7], 0
          %s306 = sshll.u32 %s5, 4
          %s307 = int_to_ptr.hbm [resolvable:$true] %s306
          %s308 = sshll.u32 [#allocation6], 4
          %s309 = int_to_ptr.vmem [resolvable:$true] %s308
          %314 = dma.hbm_to_vmem [thread:$0]  %s307, 4096, %s309, [#allocation7], 64, 64, 4
        $region32: #{tpu_custom_call.1} parent=11 // pred_fallthru
          _
        // Predicated region
        $region33: #{tpu_custom_call.1} parent=11 // pred_check
          %p315 = pneg %p174
        $region34: #{tpu_custom_call.1} parent=11 // pred_check_branch
          %317 = sbr.rel (%p315) target = $region36
        $region35: #{tpu_custom_call.1} parent=11 // pred_region
          _
        $region36: #{tpu_custom_call.1} parent=11 // pred_fallthru
          _
        // Predicated region
        $region37: #{tpu_custom_call.1} parent=11 // pred_check
          %p318 = pneg %p195
        $region38: #{tpu_custom_call.1} parent=11 // pred_check_branch
          %320 = sbr.rel (%p318) target = $region40
        $region39: #{tpu_custom_call.1} parent=11 // pred_region
          _
        $region40: #{tpu_custom_call.1} parent=11 // pred_fallthru
          _
        // Predicated region
        $region41: #{tpu_custom_call.1} parent=11 // pred_check
          %p321 = pneg %p216
        $region42: #{tpu_custom_call.1} parent=11 // pred_check_branch
          %323 = sbr.rel (%p321) target = $region44
        $region43: #{tpu_custom_call.1} parent=11 // pred_region
          _
        $region44: #{tpu_custom_call.1} parent=11 // pred_fallthru
          _
        // Predicated region
        $region45: #{tpu_custom_call.1} parent=11 // pred_check
          %p324 = pneg %p237
        $region46: #{tpu_custom_call.1} parent=11 // pred_check_branch
          %326 = sbr.rel (%p324) target = $region48
        $region47: #{tpu_custom_call.1} parent=11 // pred_region
          %328 = vsyncadd [#allocation5], 0
          %s330 = sshll.u32 %s9, 4
          %s331 = int_to_ptr.vmem [resolvable:$true] %s330
          %333 = dma.vmem_to_smem %s331, 16, [#allocation8], [#allocation5]
        $region48: #{tpu_custom_call.1} parent=11 // pred_fallthru
          _
      $region12: #{tpu_custom_call.1} parent=5 // pred_fallthru
        _
      %p334 = scmp.lt.s32.totalorder %s22, 2
      // Predicated region
      $region49: #{tpu_custom_call.1} parent=5 // pred_check
        %p335 = pneg %p334
      $region50: #{tpu_custom_call.1} parent=5 // pred_check_branch
        %337 = sbr.rel (%p335) target = $region52
      $region51: #{tpu_custom_call.1} parent=5 // pred_region
        // Predicated region
        $region53: #{tpu_custom_call.1} parent=51 // pred_check
          %p338 = pneg %p42
        $region54: #{tpu_custom_call.1} parent=51 // pred_check_branch
          %340 = sbr.rel (%p338) target = $region56
        $region55: #{tpu_custom_call.1} parent=51 // pred_region
          %p341 = scmp.lt.s32.totalorder %s22, 1
          %s342 = scalar_select %p341, %s22, 1
          %s343 = smul.addr %s342, 8
          %s344 = scalar_lea.vmem %s0, %s343
        $region56: #{tpu_custom_call.1} parent=51 // pred_fallthru
          _
      $region52: #{tpu_custom_call.1} parent=5 // pred_fallthru
        _
      %p345 = scmp.le.s32.totalorder 1, %s22
      %p346 = scmp.lt.s32.totalorder %s22, 3
      %p347 = pnand %p345, %p346
      %p348 = pneg %p347
      // Predicated region
      $region57: #{tpu_custom_call.1} parent=5 // pred_check
        _
      $region58: #{tpu_custom_call.1} parent=5 // pred_check_branch
        %350 = sbr.rel (%p347) target = $region60
      $region59: #{tpu_custom_call.1} parent=5 // pred_region
        %s351 = ssub.s32 %s22, 1
        // Predicated region
        $region61: #{tpu_custom_call.1} parent=59 // pred_check
          %p352 = pneg %p132
        $region62: #{tpu_custom_call.1} parent=59 // pred_check_branch
          %354 = sbr.rel (%p352) target = $region64
        $region63: #{tpu_custom_call.1} parent=59 // pred_region
          %356 = dma.done [#allocation3], 2496
        $region64: #{tpu_custom_call.1} parent=59 // pred_fallthru
          _
        // Predicated region
        $region65: #{tpu_custom_call.1} parent=59 // pred_check
          %p357 = pneg %p153
        $region66: #{tpu_custom_call.1} parent=59 // pred_check_branch
          %359 = sbr.rel (%p357) target = $region68
        $region67: #{tpu_custom_call.1} parent=59 // pred_region
          %361 = dma.done [#allocation7], 4096
        $region68: #{tpu_custom_call.1} parent=59 // pred_fallthru
          _
        // Predicated region
        $region69: #{tpu_custom_call.1} parent=59 // pred_check
          %p362 = pneg %p237
        $region70: #{tpu_custom_call.1} parent=59 // pred_check_branch
          %364 = sbr.rel (%p362) target = $region72
        $region71: #{tpu_custom_call.1} parent=59 // pred_region
          %366 = dma.done [#allocation5], 16
        $region72: #{tpu_custom_call.1} parent=59 // pred_fallthru
          _
        %367 = sfence
        %p368 = scmp.lt.s32.totalorder %s27, 1
        %s369 = scalar_select %p368, %s27, 1
        %s370 = smul.addr %s369, 8
        %s371 = scalar_lea.vmem %s0, %s370
        %p372 = pneg %p48
        %p373 = pneg %p45
        %p374 = pneg %p69
        %p375 = pneg %p66
        %p376 = pneg %p90
        %p377 = pneg %p87
        %p378 = pneg %p111
        %p379 = pneg %p108
        %p380 = pneg %p132
        %p381 = pneg %p129
        %p382 = pneg %p153
        %p383 = pneg %p150
        %p384 = pneg %p174
        %p385 = pneg %p171
        %p386 = pneg %p195
        %p387 = pneg %p192
        %p388 = pneg %p216
        %p389 = pneg %p213
        %p390 = pneg %p237
        %p391 = pneg %p234
        %p392 = pneg %p263
        %p393 = pneg %p260
        %s394 = sand.u32 %s250, 1
        %s395 = scalar_lea.sflag [#allocation4], %s394
        %s396 = sand.u32 %s250, 1
        %s397 = smul.addr %s396, 8
        %s398 = scalar_lea.vmem [#allocation9], %s397
        %p399 = scmp.lt.s32.totalorder %s27, 1
        %s400 = scalar_select %p399, %s27, 1
        %s401 = smul.addr %s400, 8
        %s402 = scalar_lea.vmem %s0, %s401
        %v404 = vld [vmem:[%s402] sm:$0xff]
        %v405 = vld [vmem:[%s8] sm:$0xff]
        %v406 = vpack.c.bf16 %v404, %v404
        %v407 = vld [vmem:[%s1] sm:$0xff]
        %v408 = vld [vmem:[%s1 + $0x8] sm:$0xf]
        %v409 = vld [vmem:[%s1 + $0xc] sm:$0xff]
        %v410 = vld [vmem:[%s1 + $0x14] sm:$0xf]
        %v411 = vld [vmem:[%s1 + $0x18] sm:$0xff]
        %v412 = vld [vmem:[%s1 + $0x20] sm:$0xf]
        %v419 = vunpack.c.l.b16 %v407
        %v420 = vunpack.c.h.b16 %v407
        %v421 = vunpack.c.l.b16 %v408
        %v422 = vunpack.c.l.b16 %v409
        %v423 = vunpack.c.h.b16 %v409
        %v424 = vunpack.c.l.b16 %v410
        %v425 = vunpack.c.l.b16 %v411
        %v426 = vunpack.c.h.b16 %v411
        %v427 = vunpack.c.l.b16 %v412
        %v428 = vpack.c.b16 %v422, %v419
        %v429 = vpack.c.b16 %v423, %v420
        %v430 = vpack.c.b16 %v424, %v421
        %v431 = vpack.c.b16 %v425, %v425
        %v432 = vpack.c.b16 %v426, %v426
        %v433 = vpack.c.b16 %v427, %v427
        %vm437 = vcmask 195584
        %v439 = vsel %vm437, %v406, 0
        %vm441 = vcmask 1043456
        %v443 = vsel %vm441, %v431, 0
        %v446 = vsel %vm441, %v432, 0
        %v449 = vsel %vm441, %v433, 0
        %451 = vmatpush.bf16.msra.mxu0 0
        %452 = vmatpush.bf16.msra.mxu0 0
        %453 = vmatpush.bf16.msra.mxu0 0
        %454 = vmatpush.bf16.msra.mxu0 0
        %455 = vmatpush.bf16.msra.mxu0 0
        %456 = vmatpush.bf16.msra.mxu0 0
        %457 = vmatpush.bf16.msra.mxu0 %v443
        %458 = vmatpush.bf16.msra.mxu0 %v428
        %459 = vmatmul.bf16.gmra.mxu0 %v439
        %v460 = vpop.f32.mrf.mxu0
        %v461 = vadd.f32 0.0, %v460
        %v462 = vpop.f32.mrf.mxu0
        %463 = vdwg.mxu0
        %464 = vmatpush.bf16.msra.mxu0 0
        %465 = vmatpush.bf16.msra.mxu0 0
        %466 = vmatpush.bf16.msra.mxu0 0
        %467 = vmatpush.bf16.msra.mxu0 0
        %468 = vmatpush.bf16.msra.mxu0 0
        %469 = vmatpush.bf16.msra.mxu0 0
        %470 = vmatpush.bf16.msra.mxu0 %v446
        %471 = vmatpush.bf16.msra.mxu0 %v429
        %472 = vmatmul.bf16.gmra.mxu0 %v439
        %v473 = vpop.f32.mrf.mxu0
        %v474 = vadd.f32 0.0, %v473
        %v475 = vpop.f32.mrf.mxu0
        %476 = vdwg.mxu0
        %477 = vmatpush.bf16.msra.mxu0 0
        %478 = vmatpush.bf16.msra.mxu0 0
        %479 = vmatpush.bf16.msra.mxu0 0
        %480 = vmatpush.bf16.msra.mxu0 0
        %481 = vmatpush.bf16.msra.mxu0 0
        %482 = vmatpush.bf16.msra.mxu0 0
        %483 = vmatpush.bf16.msra.mxu0 %v449
        %484 = vmatpush.bf16.msra.mxu0 %v430
        %485 = vmatmul.bf16.gmra.mxu0 %v439
        %v486 = vpop.f32.mrf.mxu0
        %v487 = vadd.f32 0.0, %v486
        %v488 = vpop.f32.mrf.mxu0
        %489 = vdwg.mxu0
        %v490 = vmul.f32 %v461, %v474
        %v491 = vperm.slane %v405, 0
        %v492 = vadd.f32 %v487, %v491
        %v493 = vmax.f32 %v492, 0.0
        %v494 = vpack.c.bf16 %v490, %v490
        %v495 = vld [vmem:[%s2] sm:$0xf]
        %v496 = vld [vmem:[%s2 + $0x4] sm:$0xf]
        %v497 = vld [vmem:[%s2 + $0x8] sm:$0xf]
        %v498 = vld [vmem:[%s2 + $0xc] sm:$0xf]
        %v499 = vld [vmem:[%s2 + $0x10] sm:$0xf]
        %v500 = vld [vmem:[%s2 + $0x14] sm:$0xf]
        %v501 = vld [vmem:[%s2 + $0x18] sm:$0xf]
        %v502 = vld [vmem:[%s2 + $0x1c] sm:$0xf]
        %v503 = vld [vmem:[%s2 + $0x20] sm:$0xf]
        %v504 = vld [vmem:[%s2 + $0x24] sm:$0xf]
        %v505 = vld [vmem:[%s2 + $0x28] sm:$0xf]
        %v506 = vld [vmem:[%s2 + $0x2c] sm:$0xf]
        %v507 = vld [vmem:[%s2 + $0x30] sm:$0xf]
        %v508 = vld [vmem:[%s2 + $0x34] sm:$0xf]
        %v509 = vld [vmem:[%s2 + $0x38] sm:$0xf]
        %v510 = vld [vmem:[%s2 + $0x3c] sm:$0xf]
        %v511 = vperm.slane %v405, 1
        %v528 = vunpack.c.l.b16 %v495
        %v529 = vunpack.c.l.b16 %v496
        %v530 = vunpack.c.l.b16 %v497
        %v531 = vunpack.c.l.b16 %v498
        %v532 = vunpack.c.l.b16 %v499
        %v533 = vunpack.c.l.b16 %v500
        %v534 = vunpack.c.l.b16 %v501
        %v535 = vunpack.c.l.b16 %v502
        %v536 = vunpack.c.l.b16 %v503
        %v537 = vunpack.c.l.b16 %v504
        %v538 = vunpack.c.l.b16 %v505
        %v539 = vunpack.c.l.b16 %v506
        %v540 = vunpack.c.l.b16 %v507
        %v541 = vunpack.c.l.b16 %v508
        %v542 = vunpack.c.l.b16 %v509
        %v543 = vunpack.c.l.b16 %v510
        %v544 = vpack.c.b16 %v529, %v528
        %v545 = vpack.c.b16 %v531, %v530
        %v546 = vpack.c.b16 %v533, %v532
        %v547 = vpack.c.b16 %v535, %v534
        %v548 = vpack.c.b16 %v537, %v536
        %v549 = vpack.c.b16 %v539, %v538
        %v550 = vpack.c.b16 %v541, %v540
        %v551 = vpack.c.b16 %v543, %v542
        %560 = vmatpush.bf16.msra.mxu0 %v551
        %561 = vmatpush.bf16.msra.mxu0 %v550
        %562 = vmatpush.bf16.msra.mxu0 %v549
        %563 = vmatpush.bf16.msra.mxu0 %v548
        %564 = vmatpush.bf16.msra.mxu0 %v547
        %565 = vmatpush.bf16.msra.mxu0 %v546
        %566 = vmatpush.bf16.msra.mxu0 %v545
        %567 = vmatpush.bf16.msra.mxu0 %v544
        %568 = vmatmul.bf16.gmra.mxu0 %v494
        %v569 = vpop.f32.mrf.mxu0
        %v570 = vadd.f32 %v511, %v569
        %v571 = vpop.f32.mrf.mxu0
        %572 = vdwg.mxu0
        %v573 = vmul.f32 %v570, 0.5
        %v574 = vtanh.pop %v573
        %v575 = vmul.f32 %v574, 0.5
        %v576 = vadd.f32 %v575, 0.5
        %v577 = vmul.f32 %v576, %v493
        %v578 = vpack.c.bf16 %v577, %v577
        %v579 = vld [vmem:[%s3] sm:$0xf]
        %v580 = vld [vmem:[%s3 + $0x4] sm:$0xf]
        %v581 = vld [vmem:[%s3 + $0x8] sm:$0xf]
        %v582 = vperm.slane %v405, 2
        %v586 = vunpack.c.l.b16 %v579
        %v587 = vunpack.c.l.b16 %v580
        %v588 = vunpack.c.l.b16 %v581
        %v589 = vpack.c.b16 %v587, %v586
        %v590 = vpack.c.b16 %v588, %v588
        %v593 = vsel %vm437, %v578, 0
        %v596 = vsel %vm441, %v590, 0
        %598 = vmatpush.bf16.msra.mxu0 0
        %599 = vmatpush.bf16.msra.mxu0 0
        %600 = vmatpush.bf16.msra.mxu0 0
        %601 = vmatpush.bf16.msra.mxu0 0
        %602 = vmatpush.bf16.msra.mxu0 0
        %603 = vmatpush.bf16.msra.mxu0 0
        %604 = vmatpush.bf16.msra.mxu0 %v596
        %605 = vmatpush.bf16.msra.mxu0 %v589
        %606 = vmatmul.bf16.gmra.mxu0 %v593
        %v607 = vpop.f32.mrf.mxu0
        %v608 = vadd.f32 %v582, %v607
        %v609 = vpop.f32.mrf.mxu0
        %610 = vdwg.mxu0
        %v611 = vmax.f32 %v608, 0.0
        %v612 = vpack.c.bf16 %v611, %v611
        %v613 = vld [vmem:[#allocation2] sm:$0xff]
        %v614 = vld [vmem:[#allocation2 + $0x8] sm:$0xff]
        %v615 = vld [vmem:[#allocation2 + $0x10] sm:$0xff]
        %v616 = vld [vmem:[#allocation2 + $0x18] sm:$0xff]
        %v617 = vld [vmem:[#allocation2 + $0x20] sm:$0xff]
        %v618 = vld [vmem:[#allocation2 + $0x28] sm:$0xff]
        %v619 = vld [vmem:[#allocation2 + $0x30] sm:$0xf]
        %v620 = vld [vmem:[#allocation2 + $0x34] sm:$0xff]
        %v621 = vld [vmem:[#allocation2 + $0x3c] sm:$0xff]
        %v622 = vld [vmem:[#allocation2 + $0x44] sm:$0xff]
        %v623 = vld [vmem:[#allocation2 + $0x4c] sm:$0xff]
        %v624 = vld [vmem:[#allocation2 + $0x54] sm:$0xff]
        %v625 = vld [vmem:[#allocation2 + $0x5c] sm:$0xff]
        %v626 = vld [vmem:[#allocation2 + $0x64] sm:$0xf]
        %v627 = vld [vmem:[#allocation2 + $0x68] sm:$0xff]
        %v628 = vld [vmem:[#allocation2 + $0x70] sm:$0xff]
        %v629 = vld [vmem:[#allocation2 + $0x78] sm:$0xff]
        %v630 = vld [vmem:[#allocation2 + $0x80] sm:$0xff]
        %v631 = vld [vmem:[#allocation2 + $0x88] sm:$0xff]
        %v632 = vld [vmem:[#allocation2 + $0x90] sm:$0xff]
        %v633 = vld [vmem:[#allocation2 + $0x98] sm:$0xf]
        %v655 = vunpack.c.l.b16 %v613
        %v656 = vunpack.c.h.b16 %v613
        %v657 = vunpack.c.l.b16 %v614
        %v658 = vunpack.c.h.b16 %v614
        %v659 = vunpack.c.l.b16 %v615
        %v660 = vunpack.c.h.b16 %v615
        %v661 = vunpack.c.l.b16 %v616
        %v662 = vunpack.c.h.b16 %v616
        %v663 = vunpack.c.l.b16 %v617
        %v664 = vunpack.c.h.b16 %v617
        %v665 = vunpack.c.l.b16 %v618
        %v666 = vunpack.c.h.b16 %v618
        %v667 = vunpack.c.l.b16 %v619
        %v668 = vunpack.c.l.b16 %v620
        %v669 = vunpack.c.h.b16 %v620
        %v670 = vunpack.c.l.b16 %v621
        %v671 = vunpack.c.h.b16 %v621
        %v672 = vunpack.c.l.b16 %v622
        %v673 = vunpack.c.h.b16 %v622
        %v674 = vunpack.c.l.b16 %v623
        %v675 = vunpack.c.h.b16 %v623
        %v676 = vunpack.c.l.b16 %v624
        %v677 = vunpack.c.h.b16 %v624
        %v678 = vunpack.c.l.b16 %v625
        %v679 = vunpack.c.h.b16 %v625
        %v680 = vunpack.c.l.b16 %v626
        %v681 = vunpack.c.l.b16 %v627
        %v682 = vunpack.c.h.b16 %v627
        %v683 = vunpack.c.l.b16 %v628
        %v684 = vunpack.c.h.b16 %v628
        %v685 = vunpack.c.l.b16 %v629
        %v686 = vunpack.c.h.b16 %v629
        %v687 = vunpack.c.l.b16 %v630
        %v688 = vunpack.c.h.b16 %v630
        %v689 = vunpack.c.l.b16 %v631
        %v690 = vunpack.c.h.b16 %v631
        %v691 = vunpack.c.l.b16 %v632
        %v692 = vunpack.c.h.b16 %v632
        %v693 = vunpack.c.l.b16 %v633
        %v694 = vpack.c.b16 %v668, %v655
        %v695 = vpack.c.b16 %v669, %v656
        %v696 = vpack.c.b16 %v670, %v657
        %v697 = vpack.c.b16 %v671, %v658
        %v698 = vpack.c.b16 %v672, %v659
        %v699 = vpack.c.b16 %v673, %v660
        %v700 = vpack.c.b16 %v674, %v661
        %v701 = vpack.c.b16 %v675, %v662
        %v702 = vpack.c.b16 %v676, %v663
        %v703 = vpack.c.b16 %v677, %v664
        %v704 = vpack.c.b16 %v678, %v665
        %v705 = vpack.c.b16 %v679, %v666
        %v706 = vpack.c.b16 %v680, %v667
        %v707 = vpack.c.b16 %v681, %v681
        %v708 = vpack.c.b16 %v682, %v682
        %v709 = vpack.c.b16 %v683, %v683
        %v710 = vpack.c.b16 %v684, %v684
        %v711 = vpack.c.b16 %v685, %v685
        %v712 = vpack.c.b16 %v686, %v686
        %v713 = vpack.c.b16 %v687, %v687
        %v714 = vpack.c.b16 %v688, %v688
        %v715 = vpack.c.b16 %v689, %v689
        %v716 = vpack.c.b16 %v690, %v690
        %v717 = vpack.c.b16 %v691, %v691
        %v718 = vpack.c.b16 %v692, %v692
        %v719 = vpack.c.b16 %v693, %v693
        %v734 = vsel %vm437, %v612, 0
        %v737 = vsel %vm441, %v707, 0
        %v740 = vsel %vm441, %v708, 0
        %v743 = vsel %vm441, %v709, 0
        %v746 = vsel %vm441, %v710, 0
        %v749 = vsel %vm441, %v711, 0
        %v752 = vsel %vm441, %v712, 0
        %v755 = vsel %vm441, %v713, 0
        %v758 = vsel %vm441, %v714, 0
        %v761 = vsel %vm441, %v715, 0
        %v764 = vsel %vm441, %v716, 0
        %v767 = vsel %vm441, %v717, 0
        %v770 = vsel %vm441, %v718, 0
        %v773 = vsel %vm441, %v719, 0
        %775 = vmatpush.bf16.msra.mxu0 0
        %776 = vmatpush.bf16.msra.mxu0 0
        %777 = vmatpush.bf16.msra.mxu0 0
        %778 = vmatpush.bf16.msra.mxu0 0
        %779 = vmatpush.bf16.msra.mxu0 0
        %780 = vmatpush.bf16.msra.mxu0 0
        %781 = vmatpush.bf16.msra.mxu0 %v737
        %782 = vmatpush.bf16.msra.mxu0 %v694
        %783 = vmatmul.bf16.gmra.mxu0 %v734
        %v784 = vpop.f32.mrf.mxu0
        %v785 = vadd.f32 0.0, %v784
        %v786 = vpop.f32.mrf.mxu0
        %787 = vdwg.mxu0
        %788 = vmatpush.bf16.msra.mxu0 0
        %789 = vmatpush.bf16.msra.mxu0 0
        %790 = vmatpush.bf16.msra.mxu0 0
        %791 = vmatpush.bf16.msra.mxu0 0
        %792 = vmatpush.bf16.msra.mxu0 0
        %793 = vmatpush.bf16.msra.mxu0 0
        %794 = vmatpush.bf16.msra.mxu0 %v740
        %795 = vmatpush.bf16.msra.mxu0 %v695
        %796 = vmatmul.bf16.gmra.mxu0 %v734
        %v797 = vpop.f32.mrf.mxu0
        %v798 = vadd.f32 0.0, %v797
        %v799 = vpop.f32.mrf.mxu0
        %800 = vdwg.mxu0
        %801 = vmatpush.bf16.msra.mxu0 0
        %802 = vmatpush.bf16.msra.mxu0 0
        %803 = vmatpush.bf16.msra.mxu0 0
        %804 = vmatpush.bf16.msra.mxu0 0
        %805 = vmatpush.bf16.msra.mxu0 0
        %806 = vmatpush.bf16.msra.mxu0 0
        %807 = vmatpush.bf16.msra.mxu0 %v743
        %808 = vmatpush.bf16.msra.mxu0 %v696
        %809 = vmatmul.bf16.gmra.mxu0 %v734
        %v810 = vpop.f32.mrf.mxu0
        %v811 = vadd.f32 0.0, %v810
        %v812 = vpop.f32.mrf.mxu0
        %813 = vdwg.mxu0
        %814 = vmatpush.bf16.msra.mxu0 0
        %815 = vmatpush.bf16.msra.mxu0 0
        %816 = vmatpush.bf16.msra.mxu0 0
        %817 = vmatpush.bf16.msra.mxu0 0
        %818 = vmatpush.bf16.msra.mxu0 0
        %819 = vmatpush.bf16.msra.mxu0 0
        %820 = vmatpush.bf16.msra.mxu0 %v746
        %821 = vmatpush.bf16.msra.mxu0 %v697
        %822 = vmatmul.bf16.gmra.mxu0 %v734
        %v823 = vpop.f32.mrf.mxu0
        %v824 = vadd.f32 0.0, %v823
        %v825 = vpop.f32.mrf.mxu0
        %826 = vdwg.mxu0
        %827 = vmatpush.bf16.msra.mxu0 0
        %828 = vmatpush.bf16.msra.mxu0 0
        %829 = vmatpush.bf16.msra.mxu0 0
        %830 = vmatpush.bf16.msra.mxu0 0
        %831 = vmatpush.bf16.msra.mxu0 0
        %832 = vmatpush.bf16.msra.mxu0 0
        %833 = vmatpush.bf16.msra.mxu0 %v749
        %834 = vmatpush.bf16.msra.mxu0 %v698
        %835 = vmatmul.bf16.gmra.mxu0 %v734
        %v836 = vpop.f32.mrf.mxu0
        %v837 = vadd.f32 0.0, %v836
        %v838 = vpop.f32.mrf.mxu0
        %839 = vdwg.mxu0
        %840 = vmatpush.bf16.msra.mxu0 0
        %841 = vmatpush.bf16.msra.mxu0 0
        %842 = vmatpush.bf16.msra.mxu0 0
        %843 = vmatpush.bf16.msra.mxu0 0
        %844 = vmatpush.bf16.msra.mxu0 0
        %845 = vmatpush.bf16.msra.mxu0 0
        %846 = vmatpush.bf16.msra.mxu0 %v752
        %847 = vmatpush.bf16.msra.mxu0 %v699
        %848 = vmatmul.bf16.gmra.mxu0 %v734
        %v849 = vpop.f32.mrf.mxu0
        %v850 = vadd.f32 0.0, %v849
        %v851 = vpop.f32.mrf.mxu0
        %852 = vdwg.mxu0
        %853 = vmatpush.bf16.msra.mxu0 0
        %854 = vmatpush.bf16.msra.mxu0 0
        %855 = vmatpush.bf16.msra.mxu0 0
        %856 = vmatpush.bf16.msra.mxu0 0
        %857 = vmatpush.bf16.msra.mxu0 0
        %858 = vmatpush.bf16.msra.mxu0 0
        %859 = vmatpush.bf16.msra.mxu0 %v755
        %860 = vmatpush.bf16.msra.mxu0 %v700
        %861 = vmatmul.bf16.gmra.mxu0 %v734
        %v862 = vpop.f32.mrf.mxu0
        %v863 = vadd.f32 0.0, %v862
        %v864 = vpop.f32.mrf.mxu0
        %865 = vdwg.mxu0
        %866 = vmatpush.bf16.msra.mxu0 0
        %867 = vmatpush.bf16.msra.mxu0 0
        %868 = vmatpush.bf16.msra.mxu0 0
        %869 = vmatpush.bf16.msra.mxu0 0
        %870 = vmatpush.bf16.msra.mxu0 0
        %871 = vmatpush.bf16.msra.mxu0 0
        %872 = vmatpush.bf16.msra.mxu0 %v758
        %873 = vmatpush.bf16.msra.mxu0 %v701
        %874 = vmatmul.bf16.gmra.mxu0 %v734
        %v875 = vpop.f32.mrf.mxu0
        %v876 = vadd.f32 0.0, %v875
        %v877 = vpop.f32.mrf.mxu0
        %878 = vdwg.mxu0
        %879 = vmatpush.bf16.msra.mxu0 0
        %880 = vmatpush.bf16.msra.mxu0 0
        %881 = vmatpush.bf16.msra.mxu0 0
        %882 = vmatpush.bf16.msra.mxu0 0
        %883 = vmatpush.bf16.msra.mxu0 0
        %884 = vmatpush.bf16.msra.mxu0 0
        %885 = vmatpush.bf16.msra.mxu0 %v761
        %886 = vmatpush.bf16.msra.mxu0 %v702
        %887 = vmatmul.bf16.gmra.mxu0 %v734
        %v888 = vpop.f32.mrf.mxu0
        %v889 = vadd.f32 0.0, %v888
        %v890 = vpop.f32.mrf.mxu0
        %891 = vdwg.mxu0
        %892 = vmatpush.bf16.msra.mxu0 0
        %893 = vmatpush.bf16.msra.mxu0 0
        %894 = vmatpush.bf16.msra.mxu0 0
        %895 = vmatpush.bf16.msra.mxu0 0
        %896 = vmatpush.bf16.msra.mxu0 0
        %897 = vmatpush.bf16.msra.mxu0 0
        %898 = vmatpush.bf16.msra.mxu0 %v764
        %899 = vmatpush.bf16.msra.mxu0 %v703
        %900 = vmatmul.bf16.gmra.mxu0 %v734
        %v901 = vpop.f32.mrf.mxu0
        %v902 = vadd.f32 0.0, %v901
        %v903 = vpop.f32.mrf.mxu0
        %904 = vdwg.mxu0
        %905 = vmatpush.bf16.msra.mxu0 0
        %906 = vmatpush.bf16.msra.mxu0 0
        %907 = vmatpush.bf16.msra.mxu0 0
        %908 = vmatpush.bf16.msra.mxu0 0
        %909 = vmatpush.bf16.msra.mxu0 0
        %910 = vmatpush.bf16.msra.mxu0 0
        %911 = vmatpush.bf16.msra.mxu0 %v767
        %912 = vmatpush.bf16.msra.mxu0 %v704
        %913 = vmatmul.bf16.gmra.mxu0 %v734
        %v914 = vpop.f32.mrf.mxu0
        %v915 = vadd.f32 0.0, %v914
        %v916 = vpop.f32.mrf.mxu0
        %917 = vdwg.mxu0
        %918 = vmatpush.bf16.msra.mxu0 0
        %919 = vmatpush.bf16.msra.mxu0 0
        %920 = vmatpush.bf16.msra.mxu0 0
        %921 = vmatpush.bf16.msra.mxu0 0
        %922 = vmatpush.bf16.msra.mxu0 0
        %923 = vmatpush.bf16.msra.mxu0 0
        %924 = vmatpush.bf16.msra.mxu0 %v770
        %925 = vmatpush.bf16.msra.mxu0 %v705
        %926 = vmatmul.bf16.gmra.mxu0 %v734
        %v927 = vpop.f32.mrf.mxu0
        %v928 = vadd.f32 0.0, %v927
        %v929 = vpop.f32.mrf.mxu0
        %930 = vdwg.mxu0
        %931 = vmatpush.bf16.msra.mxu0 0
        %932 = vmatpush.bf16.msra.mxu0 0
        %933 = vmatpush.bf16.msra.mxu0 0
        %934 = vmatpush.bf16.msra.mxu0 0
        %935 = vmatpush.bf16.msra.mxu0 0
        %936 = vmatpush.bf16.msra.mxu0 0
        %937 = vmatpush.bf16.msra.mxu0 %v773
        %938 = vmatpush.bf16.msra.mxu0 %v706
        %939 = vmatmul.bf16.gmra.mxu0 %v734
        %v940 = vpop.f32.mrf.mxu0
        %v941 = vadd.f32 0.0, %v940
        %v942 = vpop.f32.mrf.mxu0
        %943 = vdwg.mxu0
        %v944 = vmul.f32 %v785, %v837
        %v945 = vmul.f32 %v798, %v850
        %v946 = vmul.f32 %v811, %v863
        %v947 = vmul.f32 %v824, %v876
        %v948 = vmul.f32 %v944, %v889
        %v949 = vmul.f32 %v945, %v902
        %v950 = vmul.f32 %v946, %v915
        %v951 = vmul.f32 %v947, %v928
        %v952 = vpack.c.bf16 %v948, %v948
        %v953 = vpack.c.bf16 %v949, %v949
        %v954 = vpack.c.bf16 %v950, %v950
        %v955 = vpack.c.bf16 %v951, %v951
        %v956 = vld [vmem:[#allocation6] sm:$0xf]
        %v957 = vld [vmem:[#allocation6 + $0x4] sm:$0xf]
        %v958 = vld [vmem:[#allocation6 + $0x8] sm:$0xf]
        %v959 = vld [vmem:[#allocation6 + $0xc] sm:$0xf]
        %v960 = vld [vmem:[#allocation6 + $0x10] sm:$0xf]
        %v961 = vld [vmem:[#allocation6 + $0x14] sm:$0xf]
        %v962 = vld [vmem:[#allocation6 + $0x18] sm:$0xf]
        %v963 = vld [vmem:[#allocation6 + $0x1c] sm:$0xf]
        %v964 = vld [vmem:[#allocation6 + $0x20] sm:$0xf]
        %v965 = vld [vmem:[#allocation6 + $0x24] sm:$0xf]
        %v966 = vld [vmem:[#allocation6 + $0x28] sm:$0xf]
        %v967 = vld [vmem:[#allocation6 + $0x2c] sm:$0xf]
        %v968 = vld [vmem:[#allocation6 + $0x30] sm:$0xf]
        %v969 = vld [vmem:[#allocation6 + $0x34] sm:$0xf]
        %v970 = vld [vmem:[#allocation6 + $0x38] sm:$0xf]
        %v971 = vld [vmem:[#allocation6 + $0x3c] sm:$0xf]
        %v972 = vld [vmem:[#allocation6 + $0x40] sm:$0xf]
        %v973 = vld [vmem:[#allocation6 + $0x44] sm:$0xf]
        %v974 = vld [vmem:[#allocation6 + $0x48] sm:$0xf]
        %v975 = vld [vmem:[#allocation6 + $0x4c] sm:$0xf]
        %v976 = vld [vmem:[#allocation6 + $0x50] sm:$0xf]
        %v977 = vld [vmem:[#allocation6 + $0x54] sm:$0xf]
        %v978 = vld [vmem:[#allocation6 + $0x58] sm:$0xf]
        %v979 = vld [vmem:[#allocation6 + $0x5c] sm:$0xf]
        %v980 = vld [vmem:[#allocation6 + $0x60] sm:$0xf]
        %v981 = vld [vmem:[#allocation6 + $0x64] sm:$0xf]
        %v982 = vld [vmem:[#allocation6 + $0x68] sm:$0xf]
        %v983 = vld [vmem:[#allocation6 + $0x6c] sm:$0xf]
        %v984 = vld [vmem:[#allocation6 + $0x70] sm:$0xf]
        %v985 = vld [vmem:[#allocation6 + $0x74] sm:$0xf]
        %v986 = vld [vmem:[#allocation6 + $0x78] sm:$0xf]
        %v987 = vld [vmem:[#allocation6 + $0x7c] sm:$0xf]
        %v988 = vld [vmem:[#allocation6 + $0x80] sm:$0xf]
        %v989 = vld [vmem:[#allocation6 + $0x84] sm:$0xf]
        %v990 = vld [vmem:[#allocation6 + $0x88] sm:$0xf]
        %v991 = vld [vmem:[#allocation6 + $0x8c] sm:$0xf]
        %v992 = vld [vmem:[#allocation6 + $0x90] sm:$0xf]
        %v993 = vld [vmem:[#allocation6 + $0x94] sm:$0xf]
        %v994 = vld [vmem:[#allocation6 + $0x98] sm:$0xf]
        %v995 = vld [vmem:[#allocation6 + $0x9c] sm:$0xf]
        %v996 = vld [vmem:[#allocation6 + $0xa0] sm:$0xf]
        %v997 = vld [vmem:[#allocation6 + $0xa4] sm:$0xf]
        %v998 = vld [vmem:[#allocation6 + $0xa8] sm:$0xf]
        %v999 = vld [vmem:[#allocation6 + $0xac] sm:$0xf]
        %v1000 = vld [vmem:[#allocation6 + $0xb0] sm:$0xf]
        %v1001 = vld [vmem:[#allocation6 + $0xb4] sm:$0xf]
        %v1002 = vld [vmem:[#allocation6 + $0xb8] sm:$0xf]
        %v1003 = vld [vmem:[#allocation6 + $0xbc] sm:$0xf]
        %v1004 = vld [vmem:[#allocation6 + $0xc0] sm:$0xf]
        %v1005 = vld [vmem:[#allocation6 + $0xc4] sm:$0xf]
        %v1006 = vld [vmem:[#allocation6 + $0xc8] sm:$0xf]
        %v1007 = vld [vmem:[#allocation6 + $0xcc] sm:$0xf]
        %v1008 = vld [vmem:[#allocation6 + $0xd0] sm:$0xf]
        %v1009 = vld [vmem:[#allocation6 + $0xd4] sm:$0xf]
        %v1010 = vld [vmem:[#allocation6 + $0xd8] sm:$0xf]
        %v1011 = vld [vmem:[#allocation6 + $0xdc] sm:$0xf]
        %v1012 = vld [vmem:[#allocation6 + $0xe0] sm:$0xf]
        %v1013 = vld [vmem:[#allocation6 + $0xe4] sm:$0xf]
        %v1014 = vld [vmem:[#allocation6 + $0xe8] sm:$0xf]
        %v1015 = vld [vmem:[#allocation6 + $0xec] sm:$0xf]
        %v1016 = vld [vmem:[#allocation6 + $0xf0] sm:$0xf]
        %v1017 = vld [vmem:[#allocation6 + $0xf4] sm:$0xf]
        %v1018 = vld [vmem:[#allocation6 + $0xf8] sm:$0xf]
        %v1019 = vld [vmem:[#allocation6 + $0xfc] sm:$0xf]
        %v1020 = vperm.slane %v405, 3
        %v1085 = vunpack.c.l.b16 %v956
        %v1086 = vunpack.c.l.b16 %v957
        %v1087 = vunpack.c.l.b16 %v958
        %v1088 = vunpack.c.l.b16 %v959
        %v1089 = vunpack.c.l.b16 %v960
        %v1090 = vunpack.c.l.b16 %v961
        %v1091 = vunpack.c.l.b16 %v962
        %v1092 = vunpack.c.l.b16 %v963
        %v1093 = vunpack.c.l.b16 %v964
        %v1094 = vunpack.c.l.b16 %v965
        %v1095 = vunpack.c.l.b16 %v966
        %v1096 = vunpack.c.l.b16 %v967
        %v1097 = vunpack.c.l.b16 %v968
        %v1098 = vunpack.c.l.b16 %v969
        %v1099 = vunpack.c.l.b16 %v970
        %v1100 = vunpack.c.l.b16 %v971
        %v1101 = vunpack.c.l.b16 %v972
        %v1102 = vunpack.c.l.b16 %v973
        %v1103 = vunpack.c.l.b16 %v974
        %v1104 = vunpack.c.l.b16 %v975
        %v1105 = vunpack.c.l.b16 %v976
        %v1106 = vunpack.c.l.b16 %v977
        %v1107 = vunpack.c.l.b16 %v978
        %v1108 = vunpack.c.l.b16 %v979
        %v1109 = vunpack.c.l.b16 %v980
        %v1110 = vunpack.c.l.b16 %v981
        %v1111 = vunpack.c.l.b16 %v982
        %v1112 = vunpack.c.l.b16 %v983
        %v1113 = vunpack.c.l.b16 %v984
        %v1114 = vunpack.c.l.b16 %v985
        %v1115 = vunpack.c.l.b16 %v986
        %v1116 = vunpack.c.l.b16 %v987
        %v1117 = vunpack.c.l.b16 %v988
        %v1118 = vunpack.c.l.b16 %v989
        %v1119 = vunpack.c.l.b16 %v990
        %v1120 = vunpack.c.l.b16 %v991
        %v1121 = vunpack.c.l.b16 %v992
        %v1122 = vunpack.c.l.b16 %v993
        %v1123 = vunpack.c.l.b16 %v994
        %v1124 = vunpack.c.l.b16 %v995
        %v1125 = vunpack.c.l.b16 %v996
        %v1126 = vunpack.c.l.b16 %v997
        %v1127 = vunpack.c.l.b16 %v998
        %v1128 = vunpack.c.l.b16 %v999
        %v1129 = vunpack.c.l.b16 %v1000
        %v1130 = vunpack.c.l.b16 %v1001
        %v1131 = vunpack.c.l.b16 %v1002
        %v1132 = vunpack.c.l.b16 %v1003
        %v1133 = vunpack.c.l.b16 %v1004
        %v1134 = vunpack.c.l.b16 %v1005
        %v1135 = vunpack.c.l.b16 %v1006
        %v1136 = vunpack.c.l.b16 %v1007
        %v1137 = vunpack.c.l.b16 %v1008
        %v1138 = vunpack.c.l.b16 %v1009
        %v1139 = vunpack.c.l.b16 %v1010
        %v1140 = vunpack.c.l.b16 %v1011
        %v1141 = vunpack.c.l.b16 %v1012
        %v1142 = vunpack.c.l.b16 %v1013
        %v1143 = vunpack.c.l.b16 %v1014
        %v1144 = vunpack.c.l.b16 %v1015
        %v1145 = vunpack.c.l.b16 %v1016
        %v1146 = vunpack.c.l.b16 %v1017
        %v1147 = vunpack.c.l.b16 %v1018
        %v1148 = vunpack.c.l.b16 %v1019
        %v1149 = vpack.c.b16 %v1086, %v1085
        %v1150 = vpack.c.b16 %v1088, %v1087
        %v1151 = vpack.c.b16 %v1090, %v1089
        %v1152 = vpack.c.b16 %v1092, %v1091
        %v1153 = vpack.c.b16 %v1094, %v1093
        %v1154 = vpack.c.b16 %v1096, %v1095
        %v1155 = vpack.c.b16 %v1098, %v1097
        %v1156 = vpack.c.b16 %v1100, %v1099
        %v1157 = vpack.c.b16 %v1102, %v1101
        %v1158 = vpack.c.b16 %v1104, %v1103
        %v1159 = vpack.c.b16 %v1106, %v1105
        %v1160 = vpack.c.b16 %v1108, %v1107
        %v1161 = vpack.c.b16 %v1110, %v1109
        %v1162 = vpack.c.b16 %v1112, %v1111
        %v1163 = vpack.c.b16 %v1114, %v1113
        %v1164 = vpack.c.b16 %v1116, %v1115
        %v1165 = vpack.c.b16 %v1118, %v1117
        %v1166 = vpack.c.b16 %v1120, %v1119
        %v1167 = vpack.c.b16 %v1122, %v1121
        %v1168 = vpack.c.b16 %v1124, %v1123
        %v1169 = vpack.c.b16 %v1126, %v1125
        %v1170 = vpack.c.b16 %v1128, %v1127
        %v1171 = vpack.c.b16 %v1130, %v1129
        %v1172 = vpack.c.b16 %v1132, %v1131
        %v1173 = vpack.c.b16 %v1134, %v1133
        %v1174 = vpack.c.b16 %v1136, %v1135
        %v1175 = vpack.c.b16 %v1138, %v1137
        %v1176 = vpack.c.b16 %v1140, %v1139
        %v1177 = vpack.c.b16 %v1142, %v1141
        %v1178 = vpack.c.b16 %v1144, %v1143
        %v1179 = vpack.c.b16 %v1146, %v1145
        %v1180 = vpack.c.b16 %v1148, %v1147
        %1213 = vmatpush.bf16.msra.mxu0 %v1156
        %1214 = vmatpush.bf16.msra.mxu0 %v1155
        %1215 = vmatpush.bf16.msra.mxu0 %v1154
        %1216 = vmatpush.bf16.msra.mxu0 %v1153
        %1217 = vmatpush.bf16.msra.mxu0 %v1152
        %1218 = vmatpush.bf16.msra.mxu0 %v1151
        %1219 = vmatpush.bf16.msra.mxu0 %v1150
        %1220 = vmatpush.bf16.msra.mxu0 %v1149
        %1221 = vmatmul.bf16.gmra.mxu0 %v952
        %v1222 = vpop.f32.mrf.mxu0
        %v1223 = vadd.f32 %v1020, %v1222
        %v1224 = vpop.f32.mrf.mxu0
        %1225 = vdwg.mxu0
        %1226 = vmatpush.bf16.msra.mxu0 %v1164
        %1227 = vmatpush.bf16.msra.mxu0 %v1163
        %1228 = vmatpush.bf16.msra.mxu0 %v1162
        %1229 = vmatpush.bf16.msra.mxu0 %v1161
        %1230 = vmatpush.bf16.msra.mxu0 %v1160
        %1231 = vmatpush.bf16.msra.mxu0 %v1159
        %1232 = vmatpush.bf16.msra.mxu0 %v1158
        %1233 = vmatpush.bf16.msra.mxu0 %v1157
        %1234 = vmatmul.bf16.gmra.mxu0 %v953
        %v1235 = vpop.f32.mrf.mxu0
        %v1236 = vadd.f32 %v1223, %v1235
        %v1237 = vpop.f32.mrf.mxu0
        %1238 = vdwg.mxu0
        %1239 = vmatpush.bf16.msra.mxu0 %v1172
        %1240 = vmatpush.bf16.msra.mxu0 %v1171
        %1241 = vmatpush.bf16.msra.mxu0 %v1170
        %1242 = vmatpush.bf16.msra.mxu0 %v1169
        %1243 = vmatpush.bf16.msra.mxu0 %v1168
        %1244 = vmatpush.bf16.msra.mxu0 %v1167
        %1245 = vmatpush.bf16.msra.mxu0 %v1166
        %1246 = vmatpush.bf16.msra.mxu0 %v1165
        %1247 = vmatmul.bf16.gmra.mxu0 %v954
        %v1248 = vpop.f32.mrf.mxu0
        %v1249 = vadd.f32 %v1236, %v1248
        %v1250 = vpop.f32.mrf.mxu0
        %1251 = vdwg.mxu0
        %1252 = vmatpush.bf16.msra.mxu0 %v1180
        %1253 = vmatpush.bf16.msra.mxu0 %v1179
        %1254 = vmatpush.bf16.msra.mxu0 %v1178
        %1255 = vmatpush.bf16.msra.mxu0 %v1177
        %1256 = vmatpush.bf16.msra.mxu0 %v1176
        %1257 = vmatpush.bf16.msra.mxu0 %v1175
        %1258 = vmatpush.bf16.msra.mxu0 %v1174
        %1259 = vmatpush.bf16.msra.mxu0 %v1173
        %1260 = vmatmul.bf16.gmra.mxu0 %v955
        %v1261 = vpop.f32.mrf.mxu0
        %v1262 = vadd.f32 %v1249, %v1261
        %v1263 = vpop.f32.mrf.mxu0
        %1264 = vdwg.mxu0
        %v1265 = vmax.f32 %v1262, 0.0
        %v1266 = vpack.c.bf16 %v1265, %v1265
        %v1267 = vld [vmem:[%s6] sm:$0xf]
        %v1268 = vld [vmem:[%s6 + $0x4] sm:$0xf]
        %v1269 = vld [vmem:[%s6 + $0x8] sm:$0xf]
        %v1270 = vld [vmem:[%s6 + $0xc] sm:$0xf]
        %v1271 = vld [vmem:[%s6 + $0x10] sm:$0xf]
        %v1272 = vld [vmem:[%s6 + $0x14] sm:$0xf]
        %v1273 = vld [vmem:[%s6 + $0x18] sm:$0xf]
        %v1274 = vld [vmem:[%s6 + $0x1c] sm:$0xf]
        %v1275 = vld [vmem:[%s6 + $0x20] sm:$0xf]
        %v1276 = vld [vmem:[%s6 + $0x24] sm:$0xf]
        %v1277 = vld [vmem:[%s6 + $0x28] sm:$0xf]
        %v1278 = vld [vmem:[%s6 + $0x2c] sm:$0xf]
        %v1279 = vld [vmem:[%s6 + $0x30] sm:$0xf]
        %v1280 = vld [vmem:[%s6 + $0x34] sm:$0xf]
        %v1281 = vld [vmem:[%s6 + $0x38] sm:$0xf]
        %v1282 = vld [vmem:[%s6 + $0x3c] sm:$0xf]
        %v1299 = vunpack.c.l.b16 %v1267
        %v1300 = vunpack.c.l.b16 %v1268
        %v1301 = vunpack.c.l.b16 %v1269
        %v1302 = vunpack.c.l.b16 %v1270
        %v1303 = vunpack.c.l.b16 %v1271
        %v1304 = vunpack.c.l.b16 %v1272
        %v1305 = vunpack.c.l.b16 %v1273
        %v1306 = vunpack.c.l.b16 %v1274
        %v1307 = vunpack.c.l.b16 %v1275
        %v1308 = vunpack.c.l.b16 %v1276
        %v1309 = vunpack.c.l.b16 %v1277
        %v1310 = vunpack.c.l.b16 %v1278
        %v1311 = vunpack.c.l.b16 %v1279
        %v1312 = vunpack.c.l.b16 %v1280
        %v1313 = vunpack.c.l.b16 %v1281
        %v1314 = vunpack.c.l.b16 %v1282
        %v1315 = vpack.c.b16 %v1300, %v1299
        %v1316 = vpack.c.b16 %v1302, %v1301
        %v1317 = vpack.c.b16 %v1304, %v1303
        %v1318 = vpack.c.b16 %v1306, %v1305
        %v1319 = vpack.c.b16 %v1308, %v1307
        %v1320 = vpack.c.b16 %v1310, %v1309
        %v1321 = vpack.c.b16 %v1312, %v1311
        %v1322 = vpack.c.b16 %v1314, %v1313
        %1331 = vmatpush.bf16.msra.mxu0 %v1322
        %1332 = vmatpush.bf16.msra.mxu0 %v1321
        %1333 = vmatpush.bf16.msra.mxu0 %v1320
        %1334 = vmatpush.bf16.msra.mxu0 %v1319
        %1335 = vmatpush.bf16.msra.mxu0 %v1318
        %1336 = vmatpush.bf16.msra.mxu0 %v1317
        %1337 = vmatpush.bf16.msra.mxu0 %v1316
        %1338 = vmatpush.bf16.msra.mxu0 %v1315
        %1339 = vmatmul.bf16.gmra.mxu0 %v1266
        %v1340 = vpop.f32.mrf.mxu0
        %v1341 = vadd.f32 %v941, %v1340
        %v1342 = vpop.f32.mrf.mxu0
        %1343 = vdwg.mxu0
        %v1344 = vperm.slane %v405, 4
        %v1345 = vadd.f32 %v1341, %v1344
        %v1346 = vmax.f32 %v1345, 0.0
        %v1347 = vpack.c.bf16 %v1346, %v1346
        %v1348 = vld [vmem:[%s7] sm:$0xf]
        %v1349 = vld [vmem:[%s7 + $0x4] sm:$0xf]
        %v1350 = vld [vmem:[%s7 + $0x8] sm:$0xf]
        %v1351 = vld [vmem:[%s7 + $0xc] sm:$0xf]
        %v1352 = vld [vmem:[%s7 + $0x10] sm:$0xf]
        %v1353 = vld [vmem:[%s7 + $0x14] sm:$0xf]
        %v1354 = vld [vmem:[%s7 + $0x18] sm:$0xf]
        %v1355 = vld [vmem:[%s7 + $0x1c] sm:$0xf]
        %v1356 = vld [vmem:[%s7 + $0x20] sm:$0xf]
        %v1357 = vld [vmem:[%s7 + $0x24] sm:$0xf]
        %v1358 = vld [vmem:[%s7 + $0x28] sm:$0xf]
        %v1359 = vld [vmem:[%s7 + $0x2c] sm:$0xf]
        %v1360 = vld [vmem:[%s7 + $0x30] sm:$0xf]
        %v1361 = vld [vmem:[%s7 + $0x34] sm:$0xf]
        %v1362 = vld [vmem:[%s7 + $0x38] sm:$0xf]
        %v1363 = vld [vmem:[%s7 + $0x3c] sm:$0xf]
        %v1364 = vperm.slane %v405, 5
        %v1381 = vunpack.c.l.b16 %v1348
        %v1382 = vunpack.c.l.b16 %v1349
        %v1383 = vunpack.c.l.b16 %v1350
        %v1384 = vunpack.c.l.b16 %v1351
        %v1385 = vunpack.c.l.b16 %v1352
        %v1386 = vunpack.c.l.b16 %v1353
        %v1387 = vunpack.c.l.b16 %v1354
        %v1388 = vunpack.c.l.b16 %v1355
        %v1389 = vunpack.c.l.b16 %v1356
        %v1390 = vunpack.c.l.b16 %v1357
        %v1391 = vunpack.c.l.b16 %v1358
        %v1392 = vunpack.c.l.b16 %v1359
        %v1393 = vunpack.c.l.b16 %v1360
        %v1394 = vunpack.c.l.b16 %v1361
        %v1395 = vunpack.c.l.b16 %v1362
        %v1396 = vunpack.c.l.b16 %v1363
        %v1397 = vpack.c.b16 %v1382, %v1381
        %v1398 = vpack.c.b16 %v1384, %v1383
        %v1399 = vpack.c.b16 %v1386, %v1385
        %v1400 = vpack.c.b16 %v1388, %v1387
        %v1401 = vpack.c.b16 %v1390, %v1389
        %v1402 = vpack.c.b16 %v1392, %v1391
        %v1403 = vpack.c.b16 %v1394, %v1393
        %v1404 = vpack.c.b16 %v1396, %v1395
        %1413 = vmatpush.bf16.msra.mxu0 %v1404
        %1414 = vmatpush.bf16.msra.mxu0 %v1403
        %1415 = vmatpush.bf16.msra.mxu0 %v1402
        %1416 = vmatpush.bf16.msra.mxu0 %v1401
        %1417 = vmatpush.bf16.msra.mxu0 %v1400
        %1418 = vmatpush.bf16.msra.mxu0 %v1399
        %1419 = vmatpush.bf16.msra.mxu0 %v1398
        %1420 = vmatpush.bf16.msra.mxu0 %v1397
        %1421 = vmatmul.bf16.gmra.mxu0 %v1347
        %v1422 = vpop.f32.mrf.mxu0
        %v1423 = vadd.f32 %v1364, %v1422
        %v1424 = vpop.f32.mrf.mxu0
        %1425 = vdwg.mxu0
        %v1426 = vlaneseq
        %v1427 = vand.u32 %v1426, 127
        %vm1428 = vcmp.lt.s32.totalorder %v1427, 7
        %v1429 = vsel %vm1428, %v1423, -1e+30
        %vm1430 = vcmask 64512
        %v1431 = vsel %vm1430, %v1429, -inf
        %1432 = vmax.xlane.f32.xlu0 %v1431
        %v1433 = vpop.xlane.xlu0 %1432
        %v1434 = vsub.f32 %v1429, %v1433
        %v1435 = vmul.f32 %v1434, 1.442695
        %v1436 = vpow.pop %v1435
        %v1437 = vsel %vm1428, %v1436, 0.0
        %v1438 = vsel %vm1430, %v1437, 0.0
        %1439 = vadd.xlane.f32.xlu0 %v1438
        %v1440 = vpop.xlane.xlu0 %1439
        %v1441 = vlog2.pop %v1440
        %v1442 = vmul.f32 %v1441, 0.6931472
        %v1443 = vsub.f32 %v1434, %v1442
        %v1444 = vsel %vm1428, %v1443, 0.0
        %s1445 = sld [smem:[#allocation8]]
        %v1446 = vstv %s1445
        %v1447 = vmul.f32 %v1446, %v404
        %s1448 = sld [smem:[#allocation8 + $0x1]]
        %v1449 = vstv %s1448
        %v1450 = vmul.f32 %v1449, %v404
        %1452 = vrot.lane.b32.xlu0 %v1450, 120
        %v1453 = vpop.permute.xlu0 %1452
        %v1455 = vadd.f32 %v1447, %v1453
        %s1456 = sld [smem:[#allocation8 + $0x2]]
        %v1457 = vstv %s1456
        %v1458 = vmul.f32 %v1457, %v404
        %1460 = vrot.lane.b32.xlu0 %v1458, 112
        %v1461 = vpop.permute.xlu0 %1460
        %v1463 = vadd.f32 %v1455, %v1461
        %s1464 = sld [smem:[#allocation8 + $0x3]]
        %v1465 = vstv %s1464
        %v1466 = vmul.f32 %v1465, %v1444
        %v1467 = vadd.f32 %v1463, %v1466
        %1468 = vst.msk [vmem:[%s398] sm:$0xff] %vm1430, %v1467
        %1470 = vrot.lane.b32.xlu0 %v1444, 8
        %v1471 = vpop.permute.xlu0 %1470
        %vm1473 = vcmask 130112
        %1474 = vst.msk [vmem:[%s398] sm:$0xff] %vm1473, %v1471
        %1476 = vrot.lane.b32.xlu0 %v570, 16
        %v1477 = vpop.permute.xlu0 %1476
        %vm1479 = vcmask 326784
        %1480 = vst.msk [vmem:[%s398] sm:$0xff] %vm1479, %v1477
        %s1481 = sand.u32 %s250, 1
        %s1482 = scalar_lea.sflag [#allocation4], %s1481
        %s1483 = sand.u32 %s250, 1
        %s1484 = smul.addr %s1483, 8
        %s1485 = scalar_lea.vmem [#allocation9], %s1484
        // Predicated region
        $region73: #{tpu_custom_call.1} parent=59 // pred_check
          %p1486 = pneg %p260
        $region74: #{tpu_custom_call.1} parent=59 // pred_check_branch
          %1488 = sbr.rel (%p1486) target = $region76
        $region75: #{tpu_custom_call.1} parent=59 // pred_region
          %1490 = vsyncadd %s1482, 0
          %s1491 = smul.addr %s27, 8
          %s1492 = scalar_lea.hbm %s10, %s1491
          %s1494 = sshll.u32 %s1485, 4
          %s1495 = int_to_ptr.vmem [resolvable:$true] %s1494
          %s1496 = sshll.u32 %s1492, 4
          %s1497 = int_to_ptr.hbm [resolvable:$true] %s1496
          %1499 = dma.vmem_to_hbm [thread:$0]  %s1495, 128, %s1497, %s1482
        $region76: #{tpu_custom_call.1} parent=59 // pred_fallthru
          _
      $region60: #{tpu_custom_call.1} parent=5 // pred_fallthru
        _
      %p1500 = scmp.le.s32.totalorder 2, %s22
      // Predicated region
      $region77: #{tpu_custom_call.1} parent=5 // pred_check
        %p1501 = pneg %p1500
      $region78: #{tpu_custom_call.1} parent=5 // pred_check_branch
        %1503 = sbr.rel (%p1501) target = $region80
      $region79: #{tpu_custom_call.1} parent=5 // pred_region
        %s1504 = ssub.s32 %s22, 2
        // Predicated region
        $region81: #{tpu_custom_call.1} parent=79 // pred_check
          %p1505 = pneg %p266
        $region82: #{tpu_custom_call.1} parent=79 // pred_check_branch
          %1507 = sbr.rel (%p1505) target = $region84
        $region83: #{tpu_custom_call.1} parent=79 // pred_region
          %s1508 = sand.u32 %s251, 1
          %s1509 = scalar_lea.sflag [#allocation4], %s1508
          %s1510 = sand.u32 %s251, 1
          %s1511 = smul.addr %s1510, 8
          %s1512 = scalar_lea.vmem [#allocation9], %s1511
          %1514 = dma.done %s1509, 128
        $region84: #{tpu_custom_call.1} parent=79 // pred_fallthru
          _
      $region80: #{tpu_custom_call.1} parent=5 // pred_fallthru
        _
    $region6: #{tpu_custom_call.1} parent=1 // loop_footer
      %s26 = sadd.s32 1, %s22
    $region7: #{tpu_custom_call.1} parent=1 // loop_footer_branch
      %21 = sbr.rel target = $region3
    $region8: #{tpu_custom_call.1} parent=1 // loop_exit
      _
    %1515 = vsyncpa [#allocation3], 1
    %s1516 = scalar_lea.sflag [#allocation3], 1
    %1517 = vsyncpa %s1516, 1
    %1518 = vsyncpa [#allocation7], 1
    %1519 = vsyncpa [#allocation4], 1
    %s1520 = scalar_lea.sflag [#allocation4], 1
    %1521 = vsyncpa %s1520, 1
    %1522 = vsyncpa [#allocation5], 1
    %s1523 = scalar_lea.sflag [#allocation5], 1
    %1524 = vsyncpa %s1523, 1

</llo_original>
